<compile_context>
chip_gen: v6e
topology: v6e:2x2x1
jax: 0.10.0
libtpu: 0.0.40
codegen_flags: <defaults>
</compile_context>

<pallas_src>
import functools

import jax
import jax.numpy as jnp
from jax import lax
from jax.experimental import pallas as pl
from jax.experimental.pallas import tpu as pltpu


def _round_up(x, m):
    return (x + m - 1) // m * m


# --------------------------------- kernel -----------------------------------


def _attention_kernel(x_ref, ywt_ref, bias_ref, out_ref, *, k, n_split, add_bias):
    """Process one (tile_n, Mp) block of output rows.

    x_ref:    (TN, D)   normalized feat_x rows, matmul dtype (bf16 by default)
    ywt_ref:  (D,  Mp)  W1 @ (feat_y / ||feat_y||)^T, zero-padded to Mp columns
    bias_ref: (1,  Mp)  0 for real columns, -9e15 for padded columns
    out_ref:  (TN, Mp)  attention rows
    """
    e = jnp.dot(x_ref[...], ywt_ref[...],
                preferred_element_type=jnp.float32)          # MXU, f32 accumulate
    if add_bias:
        e = e + bias_ref[...]                                # mask padded columns

    tn = e.shape[0]
    h = tn // n_split

    # Split the rows into n_split independent groups: the k-1 serialized
    # cross-lane max passes become independent chains, filling both XLU units
    # (v6e/v7x) and giving the VLIW scheduler filler to hide load/store latency.
    e_parts = [e[i * h:(i + 1) * h] for i in range(n_split)]
    m_parts = [jnp.max(ep, axis=1, keepdims=True) for ep in e_parts]  # row max
    works = list(e_parts)
    thrs = list(m_parts)
    for _ in range(k - 1):                                   # k is a small static int
        works = [jnp.where(w >= t, -jnp.inf, w)              # drop current max (VPU)
                 for w, t in zip(works, thrs)]
        thrs = [jnp.max(w, axis=1, keepdims=True)            # next max (XLU)
                for w in works]
    # thrs[i] == k-th largest value per row.  Exact value ties at the boundary
    # keep all tied columns (torch.topk would keep exactly k of them).

    for i in range(n_split):
        ep, mx, th = e_parts[i], m_parts[i], thrs[i]
        keep = ep >= th
        ex = jnp.where(keep, jnp.exp(ep - mx), 0.0)          # EUP exp; dropped cols = 0
        l = jnp.sum(ex, axis=1, keepdims=True)               # XLU row sum, >= 1
        # softmax(A) with A = -9e15 outside the top-k gives exp(...) == 0 there,
        # so this equals the module's softmax; the exact reciprocal only costs
        # per-row work.
        out_ref[i * h:(i + 1) * h, :] = (
            ex * pl.reciprocal(l, approx=False)).astype(out_ref.dtype)


# ------------------------------ host-side plan -------------------------------


def _preprocess(feat_x, feat_y, w1, matmul_dtype):
    """Fold the norm division and W1 into the matmul operands.

    e = (x @ W1 @ y^T) / (||x|| ||y|| + 1e-7)  ==  (x/||x||) @ [W1 @ (y/||y||)^T]
    (up to the 1e-7 epsilon; zero-norm rows map to 0 in both formulations).
    """
    inv_nx = lax.rsqrt(jnp.sum(feat_x * feat_x, axis=1, keepdims=True) + 1e-12)
    inv_ny = lax.rsqrt(jnp.sum(feat_y * feat_y, axis=1, keepdims=True) + 1e-12)
    x_n = (feat_x * inv_nx).astype(matmul_dtype)                        # (N, D)
    ywt = jnp.dot(w1, (feat_y * inv_ny).T,
                  precision=lax.Precision.HIGHEST).astype(matmul_dtype)  # (D, M)
    return x_n, ywt


def _vmem_capacity_bytes():
    """Per-core VMEM capacity; conservative (v7x) default if the query fails."""
    try:
        cap = int(getattr(pltpu.get_tpu_info(), "vmem_capacity_bytes", 0))
        if cap > 0:
            return cap
    except Exception:
        pass
    return 64 * 1024 * 1024


def _plan_tiles(n, d, mp, in_itemsize, out_itemsize):
    """Generation-aware tile_n / vmem_limit_bytes plan.

    Counts the resident ywt operand and all per-row buffers so v7x (64 MiB)
    does not overflow while v5e/v6e (128 MiB) are not stuck with tiny tiles.
    """
    cap = _vmem_capacity_bytes()
    align = 128                                       # MXU-dense row tiles

    # Account for 2 buffers for the grid-invariant operands even though we
    # request Buffered(1) -- safe if the single-buffer request is ignored.
    ywt_bytes = 2 * d * mp * in_itemsize
    bias_bytes = 2 * 8 * mp * 4
    budget = int(cap * 0.70) - ywt_bytes - bias_bytes
    budget = max(budget, 2 * 1024 * 1024)

    # Per tile_n row: double-buffered x tile + double-buffered out tile +
    # ~6 live (tile_n, Mp) f32 temporaries in the top-k scan.
    per_row = 2 * d * in_itemsize + 2 * mp * out_itemsize + 6 * mp * 4
    t = budget // max(per_row, 1)
    t = max(align, (t // align) * align)
    t = min(t, 1024)                                  # diminishing returns past ~1K rows

    n_pad = _round_up(n, align)
    if n_pad > align:
        # keep >= 2 grid steps so both TensorCores on a v7x chip get work
        t = min(t, max(align, _round_up(-(-n_pad // 2), align)))
    t = min(t, n_pad)

    est = (2 * t * d * in_itemsize + ywt_bytes + bias_bytes
           + 2 * t * mp * out_itemsize + 6 * t * mp * 4)
    vmem_limit = int(min(max(int(est * 1.2), 32 * 1024 * 1024),
                         cap - 8 * 1024 * 1024))
    return int(t), int(vmem_limit)


def attention_layer(feat_x, feat_y, w1, k, *, tile_n=None,
                    matmul_dtype=jnp.bfloat16, out_dtype=jnp.float32,
                    interpret=False):
    n, d = feat_x.shape
    m, d2 = feat_y.shape
    assert d == d2, "feat_x.shape[1] must equal feat_y.shape[1]"
    assert w1.shape == (d, d), "module's mm chain requires hidden_dim == in_dim"
    assert 1 <= k <= m, "need 1 <= k <= feat_y.shape[0]"

    x_n, ywt = _preprocess(feat_x, feat_y, w1, matmul_dtype)
    in_itemsize = jnp.dtype(matmul_dtype).itemsize
    out_itemsize = jnp.dtype(out_dtype).itemsize

    mp = _round_up(m, 128)                       # lane-dense last dim everywhere
    auto_tile, vmem_limit = _plan_tiles(n, d, mp, in_itemsize, out_itemsize)
    if tile_n is None:
        tile_n = auto_tile
    tile_n = max(16, (int(tile_n) // 16) * 16)   # bf16-friendly sublane multiple
    np_ = _round_up(n, tile_n)
    n_split = 2 if (tile_n // 2) % 8 == 0 else 1

    # zero padding: padded y columns are masked by the bias row, padded x rows
    # are sliced off at the end.
    x_n = jnp.pad(x_n, ((0, np_ - n), (0, 0)))
    ywt = jnp.pad(ywt, ((0, 0), (0, mp - m)))
    add_bias = (mp != m)
    bias = jnp.where(jnp.arange(mp) < m, 0.0, -9.0e15).astype(jnp.float32)[None, :]

    kernel = functools.partial(_attention_kernel, k=int(k),
                               n_split=int(n_split), add_bias=add_bias)

    # TODO(synk): for very large M (ywt + the (tile_n, Mp) out tile exceeding the
    # per-generation VMEM budget, notably on v7x's 64 MiB), add a second
    # "arbitrary" grid axis over Mp tiles with an online running top-k threshold
    # + softmax accumulator instead of keeping whole rows resident.

    def _call(single_buffer):
        kw = dict(pipeline_mode=pl.Buffered(1)) if single_buffer else {}
        return pl.pallas_call(
            kernel,
            out_shape=jax.ShapeDtypeStruct((np_, mp), out_dtype),
            grid_spec=pltpu.PrefetchScalarGridSpec(
                num_scalar_prefetch=0,
                grid=(np_ // tile_n,),
                in_specs=[
                    pl.BlockSpec((tile_n, d), lambda i: (i, 0)),   # normalized x tile
                    pl.BlockSpec((d, mp), lambda i: (0, 0), **kw),  # resident W1 @ y_n^T
                    pl.BlockSpec((1, mp), lambda i: (0, 0), **kw),  # pad-mask bias row
                ],
                out_specs=pl.BlockSpec((tile_n, mp), lambda i: (i, 0)),
            ),
            compiler_params=pltpu.CompilerParams(
                dimension_semantics=("parallel",),
                vmem_limit_bytes=vmem_limit),
            interpret=interpret,
        )(x_n, ywt, bias)

    try:
        out = _call(single_buffer=True)
    except Exception:
        # Graceful fallback if this JAX build rejects pipeline_mode=pl.Buffered(1)
        # for grid-invariant operands; costs one extra ywt buffer of VMEM only.
        out = _call(single_buffer=False)
    return out[:n, :m]


# ------------------------------- verification --------------------------------


def xavier_uniform(key, shape):
    fan_in, fan_out = shape
    a = (6.0 / (fan_in + fan_out)) ** 0.5
    return jax.random.uniform(key, shape, jnp.float32, -a, a)


def reference_attention(feat_x, feat_y, w1, k, matmul_dtype=jnp.bfloat16):
    """Pure-JAX replica of the module's forward, using the same folded /
    mixed-precision operands as the kernel so top-k selections agree."""
    x_n, ywt = _preprocess(feat_x, feat_y, w1, matmul_dtype)
    e = jnp.dot(x_n.astype(jnp.float32), ywt.astype(jnp.float32),
                precision=lax.Precision.HIGHEST)
    vals, idx = lax.top_k(e, k)
    rows = jnp.arange(e.shape[0])[:, None]
    a = jnp.full(e.shape, -9.0e15, jnp.float32).at[rows, idx].set(vals)
    return jax.nn.softmax(a, axis=1)


if __name__ == "__main__":
    # hidden_dim must equal in_dim for the module's mm chain to typecheck.
    in_dim = hidden_dim = 128
    N, M, topk = 200, 96, 8          # deliberately unaligned: exercises row/col padding

    key = jax.random.PRNGKey(0)
    k1, k2, k3, k4 = jax.random.split(key, 4)
    feat_x = jax.random.normal(k1, (N, in_dim), dtype=jnp.float32)
    feat_y = jax.random.normal(k2, (M, in_dim), dtype=jnp.float32)
    W = xavier_uniform(k3, (in_dim, hidden_dim))   # declared by the module, unused in forward
    W1 = xavier_uniform(k4, (in_dim, hidden_dim))

    att = attention_layer(feat_x, feat_y, W1, topk)
    att = jax.block_until_ready(att)
    assert att.shape == (N, M)

    ref = reference_attention(feat_x, feat_y, W1, topk)
    max_diff = float(jnp.max(jnp.abs(att - ref)))
    assert jnp.allclose(att, ref, atol=5e-3, rtol=5e-3), f"mismatch vs reference: {max_diff}"

    # module semantics: each row is a softmax over exactly `topk` kept columns
    assert jnp.allclose(jnp.sum(att, axis=1), 1.0, atol=5e-3), "rows must sum to 1"
    assert bool(jnp.all(jnp.sum(att > 1e-6, axis=1) == topk)), "each row must keep k entries"

    print("KERNEL_OK")
</pallas_src>

<mosaic_0001>
module attributes {stable_mosaic.version = 11 : i64} {
  func.func @_attention_kernel(%arg0: i32, %arg1: memref<128x128xbf16, #tpu.memory_space<vmem>>, %arg2: memref<128x128xbf16, #tpu.memory_space<vmem>>, %arg3: memref<1x128xf32, #tpu.memory_space<vmem>>, %arg4: memref<128x128xf32, #tpu.memory_space<vmem>>) attributes {dimension_semantics = [#tpu.dimension_semantics<parallel>], iteration_bounds = array<i64: 2>, scalar_prefetch = 0 : i64, scratch_operands = 0 : i64, tpu.core_type = #tpu.core_type<tc>, window_params = [{transform_indices = @transform_0, window_bounds = array<i64: 128, 128>}, {pipeline_mode = #tpu.pipeline_mode<synchronous>, transform_indices = @transform_1, window_bounds = array<i64: 128, 128>}, {pipeline_mode = #tpu.pipeline_mode<synchronous>, transform_indices = @transform_2, window_bounds = array<i64: 1, 128>}, {transform_indices = @transform_3, window_bounds = array<i64: 128, 128>}]} {
    %c0 = arith.constant 0 : index
    %c0_0 = arith.constant 0 : index
    %0 = vector.load %arg1[%c0, %c0_0] : memref<128x128xbf16, #tpu.memory_space<vmem>>, vector<128x128xbf16>
    %c0_1 = arith.constant 0 : index
    %c0_2 = arith.constant 0 : index
    %1 = vector.load %arg2[%c0_1, %c0_2] : memref<128x128xbf16, #tpu.memory_space<vmem>>, vector<128x128xbf16>
    %cst = arith.constant dense<0.000000e+00> : vector<128x128xf32>
    %2 = tpu.matmul %0, %1, %cst {dimension_numbers = #tpu.dot_dimension_numbers<[1], [0], [0], [1], [0, 0, 1, 1], [], []>} : vector<128x128xbf16>, vector<128x128xbf16>, vector<128x128xf32> -> vector<128x128xf32>
    %c0_3 = arith.constant 0 : index
    %c0_4 = arith.constant 0 : index
    %3 = vector.load %arg3[%c0_3, %c0_4] : memref<1x128xf32, #tpu.memory_space<vmem>>, vector<1x128xf32>
    %4 = vector.broadcast %3 : vector<1x128xf32> to vector<128x128xf32>
    %5 = arith.addf %2, %4 : vector<128x128xf32>
    %6 = vector.extract_strided_slice %5 {offsets = [0, 0], sizes = [64, 128], strides = [1, 1]} : vector<128x128xf32> to vector<64x128xf32>
    %7 = vector.extract_strided_slice %5 {offsets = [64, 0], sizes = [64, 128], strides = [1, 1]} : vector<128x128xf32> to vector<64x128xf32>
    %cst_5 = arith.constant dense<0xFF800000> : vector<64xf32>
    %8 = vector.multi_reduction <maximumf>, %6, %cst_5 [1] : vector<64x128xf32> to vector<64xf32>
    %9 = vector.shape_cast %8 : vector<64xf32> to vector<64x1xf32>
    %cst_6 = arith.constant dense<0xFF800000> : vector<64xf32>
    %10 = vector.multi_reduction <maximumf>, %7, %cst_6 [1] : vector<64x128xf32> to vector<64xf32>
    %11 = vector.shape_cast %10 : vector<64xf32> to vector<64x1xf32>
    %12 = vector.broadcast %9 : vector<64x1xf32> to vector<64x128xf32>
    %13 = arith.cmpf oge, %6, %12 : vector<64x128xf32>
    %cst_7 = arith.constant 0xFF800000 : f32
    %14 = vector.broadcast %cst_7 : f32 to vector<64x128xf32>
    %15 = arith.select %13, %14, %6 : vector<64x128xi1>, vector<64x128xf32>
    %16 = vector.broadcast %11 : vector<64x1xf32> to vector<64x128xf32>
    %17 = arith.cmpf oge, %7, %16 : vector<64x128xf32>
    %cst_8 = arith.constant 0xFF800000 : f32
    %18 = vector.broadcast %cst_8 : f32 to vector<64x128xf32>
    %19 = arith.select %17, %18, %7 : vector<64x128xi1>, vector<64x128xf32>
    %cst_9 = arith.constant dense<0xFF800000> : vector<64xf32>
    %20 = vector.multi_reduction <maximumf>, %15, %cst_9 [1] : vector<64x128xf32> to vector<64xf32>
    %21 = vector.shape_cast %20 : vector<64xf32> to vector<64x1xf32>
    %cst_10 = arith.constant dense<0xFF800000> : vector<64xf32>
    %22 = vector.multi_reduction <maximumf>, %19, %cst_10 [1] : vector<64x128xf32> to vector<64xf32>
    %23 = vector.shape_cast %22 : vector<64xf32> to vector<64x1xf32>
    %24 = vector.broadcast %21 : vector<64x1xf32> to vector<64x128xf32>
    %25 = arith.cmpf oge, %15, %24 : vector<64x128xf32>
    %cst_11 = arith.constant 0xFF800000 : f32
    %26 = vector.broadcast %cst_11 : f32 to vector<64x128xf32>
    %27 = arith.select %25, %26, %15 : vector<64x128xi1>, vector<64x128xf32>
    %28 = vector.broadcast %23 : vector<64x1xf32> to vector<64x128xf32>
    %29 = arith.cmpf oge, %19, %28 : vector<64x128xf32>
    %cst_12 = arith.constant 0xFF800000 : f32
    %30 = vector.broadcast %cst_12 : f32 to vector<64x128xf32>
    %31 = arith.select %29, %30, %19 : vector<64x128xi1>, vector<64x128xf32>
    %cst_13 = arith.constant dense<0xFF800000> : vector<64xf32>
    %32 = vector.multi_reduction <maximumf>, %27, %cst_13 [1] : vector<64x128xf32> to vector<64xf32>
    %33 = vector.shape_cast %32 : vector<64xf32> to vector<64x1xf32>
    %cst_14 = arith.constant dense<0xFF800000> : vector<64xf32>
    %34 = vector.multi_reduction <maximumf>, %31, %cst_14 [1] : vector<64x128xf32> to vector<64xf32>
    %35 = vector.shape_cast %34 : vector<64xf32> to vector<64x1xf32>
    %36 = vector.broadcast %33 : vector<64x1xf32> to vector<64x128xf32>
    %37 = arith.cmpf oge, %27, %36 : vector<64x128xf32>
    %cst_15 = arith.constant 0xFF800000 : f32
    %38 = vector.broadcast %cst_15 : f32 to vector<64x128xf32>
    %39 = arith.select %37, %38, %27 : vector<64x128xi1>, vector<64x128xf32>
    %40 = vector.broadcast %35 : vector<64x1xf32> to vector<64x128xf32>
    %41 = arith.cmpf oge, %31, %40 : vector<64x128xf32>
    %cst_16 = arith.constant 0xFF800000 : f32
    %42 = vector.broadcast %cst_16 : f32 to vector<64x128xf32>
    %43 = arith.select %41, %42, %31 : vector<64x128xi1>, vector<64x128xf32>
    %cst_17 = arith.constant dense<0xFF800000> : vector<64xf32>
    %44 = vector.multi_reduction <maximumf>, %39, %cst_17 [1] : vector<64x128xf32> to vector<64xf32>
    %45 = vector.shape_cast %44 : vector<64xf32> to vector<64x1xf32>
    %cst_18 = arith.constant dense<0xFF800000> : vector<64xf32>
    %46 = vector.multi_reduction <maximumf>, %43, %cst_18 [1] : vector<64x128xf32> to vector<64xf32>
    %47 = vector.shape_cast %46 : vector<64xf32> to vector<64x1xf32>
    %48 = vector.broadcast %45 : vector<64x1xf32> to vector<64x128xf32>
    %49 = arith.cmpf oge, %39, %48 : vector<64x128xf32>
    %cst_19 = arith.constant 0xFF800000 : f32
    %50 = vector.broadcast %cst_19 : f32 to vector<64x128xf32>
    %51 = arith.select %49, %50, %39 : vector<64x128xi1>, vector<64x128xf32>
    %52 = vector.broadcast %47 : vector<64x1xf32> to vector<64x128xf32>
    %53 = arith.cmpf oge, %43, %52 : vector<64x128xf32>
    %cst_20 = arith.constant 0xFF800000 : f32
    %54 = vector.broadcast %cst_20 : f32 to vector<64x128xf32>
    %55 = arith.select %53, %54, %43 : vector<64x128xi1>, vector<64x128xf32>
    %cst_21 = arith.constant dense<0xFF800000> : vector<64xf32>
    %56 = vector.multi_reduction <maximumf>, %51, %cst_21 [1] : vector<64x128xf32> to vector<64xf32>
    %57 = vector.shape_cast %56 : vector<64xf32> to vector<64x1xf32>
    %cst_22 = arith.constant dense<0xFF800000> : vector<64xf32>
    %58 = vector.multi_reduction <maximumf>, %55, %cst_22 [1] : vector<64x128xf32> to vector<64xf32>
    %59 = vector.shape_cast %58 : vector<64xf32> to vector<64x1xf32>
    %60 = vector.broadcast %57 : vector<64x1xf32> to vector<64x128xf32>
    %61 = arith.cmpf oge, %51, %60 : vector<64x128xf32>
    %cst_23 = arith.constant 0xFF800000 : f32
    %62 = vector.broadcast %cst_23 : f32 to vector<64x128xf32>
    %63 = arith.select %61, %62, %51 : vector<64x128xi1>, vector<64x128xf32>
    %64 = vector.broadcast %59 : vector<64x1xf32> to vector<64x128xf32>
    %65 = arith.cmpf oge, %55, %64 : vector<64x128xf32>
    %cst_24 = arith.constant 0xFF800000 : f32
    %66 = vector.broadcast %cst_24 : f32 to vector<64x128xf32>
    %67 = arith.select %65, %66, %55 : vector<64x128xi1>, vector<64x128xf32>
    %cst_25 = arith.constant dense<0xFF800000> : vector<64xf32>
    %68 = vector.multi_reduction <maximumf>, %63, %cst_25 [1] : vector<64x128xf32> to vector<64xf32>
    %69 = vector.shape_cast %68 : vector<64xf32> to vector<64x1xf32>
    %cst_26 = arith.constant dense<0xFF800000> : vector<64xf32>
    %70 = vector.multi_reduction <maximumf>, %67, %cst_26 [1] : vector<64x128xf32> to vector<64xf32>
    %71 = vector.shape_cast %70 : vector<64xf32> to vector<64x1xf32>
    %72 = vector.broadcast %69 : vector<64x1xf32> to vector<64x128xf32>
    %73 = arith.cmpf oge, %63, %72 : vector<64x128xf32>
    %cst_27 = arith.constant 0xFF800000 : f32
    %74 = vector.broadcast %cst_27 : f32 to vector<64x128xf32>
    %75 = arith.select %73, %74, %63 : vector<64x128xi1>, vector<64x128xf32>
    %76 = vector.broadcast %71 : vector<64x1xf32> to vector<64x128xf32>
    %77 = arith.cmpf oge, %67, %76 : vector<64x128xf32>
    %cst_28 = arith.constant 0xFF800000 : f32
    %78 = vector.broadcast %cst_28 : f32 to vector<64x128xf32>
    %79 = arith.select %77, %78, %67 : vector<64x128xi1>, vector<64x128xf32>
    %cst_29 = arith.constant dense<0xFF800000> : vector<64xf32>
    %80 = vector.multi_reduction <maximumf>, %75, %cst_29 [1] : vector<64x128xf32> to vector<64xf32>
    %81 = vector.shape_cast %80 : vector<64xf32> to vector<64x1xf32>
    %cst_30 = arith.constant dense<0xFF800000> : vector<64xf32>
    %82 = vector.multi_reduction <maximumf>, %79, %cst_30 [1] : vector<64x128xf32> to vector<64xf32>
    %83 = vector.shape_cast %82 : vector<64xf32> to vector<64x1xf32>
    %84 = vector.broadcast %81 : vector<64x1xf32> to vector<64x128xf32>
    %85 = arith.cmpf oge, %75, %84 : vector<64x128xf32>
    %cst_31 = arith.constant 0xFF800000 : f32
    %86 = vector.broadcast %cst_31 : f32 to vector<64x128xf32>
    %87 = arith.select %85, %86, %75 : vector<64x128xi1>, vector<64x128xf32>
    %88 = vector.broadcast %83 : vector<64x1xf32> to vector<64x128xf32>
    %89 = arith.cmpf oge, %79, %88 : vector<64x128xf32>
    %cst_32 = arith.constant 0xFF800000 : f32
    %90 = vector.broadcast %cst_32 : f32 to vector<64x128xf32>
    %91 = arith.select %89, %90, %79 : vector<64x128xi1>, vector<64x128xf32>
    %cst_33 = arith.constant dense<0xFF800000> : vector<64xf32>
    %92 = vector.multi_reduction <maximumf>, %87, %cst_33 [1] : vector<64x128xf32> to vector<64xf32>
    %93 = vector.shape_cast %92 : vector<64xf32> to vector<64x1xf32>
    %cst_34 = arith.constant dense<0xFF800000> : vector<64xf32>
    %94 = vector.multi_reduction <maximumf>, %91, %cst_34 [1] : vector<64x128xf32> to vector<64xf32>
    %95 = vector.shape_cast %94 : vector<64xf32> to vector<64x1xf32>
    %96 = vector.broadcast %93 : vector<64x1xf32> to vector<64x128xf32>
    %97 = arith.cmpf oge, %6, %96 : vector<64x128xf32>
    %98 = vector.broadcast %9 : vector<64x1xf32> to vector<64x128xf32>
    %99 = arith.subf %6, %98 : vector<64x128xf32>
    %100 = math.exp %99 : vector<64x128xf32>
    %cst_35 = arith.constant 0.000000e+00 : f32
    %101 = vector.broadcast %cst_35 : f32 to vector<64x128xf32>
    %102 = arith.select %97, %100, %101 : vector<64x128xi1>, vector<64x128xf32>
    %cst_36 = arith.constant dense<0.000000e+00> : vector<64xf32>
    %103 = vector.multi_reduction <add>, %102, %cst_36 [1] : vector<64x128xf32> to vector<64xf32>
    %104 = vector.shape_cast %103 : vector<64xf32> to vector<64x1xf32>
    %105 = tpu.reciprocal %104 : vector<64x1xf32> -> vector<64x1xf32>
    %106 = vector.broadcast %105 : vector<64x1xf32> to vector<64x128xf32>
    %107 = arith.mulf %102, %106 : vector<64x128xf32>
    %c0_37 = arith.constant 0 : index
    %c0_38 = arith.constant 0 : index
    %108 = vector.load %arg4[%c0_37, %c0_38] : memref<128x128xf32, #tpu.memory_space<vmem>>, vector<64x128xf32>
    tpu.vector_store %arg4[%c0_37, %c0_38], %107 {strides = array<i32>} : memref<128x128xf32, #tpu.memory_space<vmem>>, vector<64x128xf32>,
    %109 = vector.broadcast %95 : vector<64x1xf32> to vector<64x128xf32>
    %110 = arith.cmpf oge, %7, %109 : vector<64x128xf32>
    %111 = vector.broadcast %11 : vector<64x1xf32> to vector<64x128xf32>
    %112 = arith.subf %7, %111 : vector<64x128xf32>
    %113 = math.exp %112 : vector<64x128xf32>
    %cst_39 = arith.constant 0.000000e+00 : f32
    %114 = vector.broadcast %cst_39 : f32 to vector<64x128xf32>
    %115 = arith.select %110, %113, %114 : vector<64x128xi1>, vector<64x128xf32>
    %cst_40 = arith.constant dense<0.000000e+00> : vector<64xf32>
    %116 = vector.multi_reduction <add>, %115, %cst_40 [1] : vector<64x128xf32> to vector<64xf32>
    %117 = vector.shape_cast %116 : vector<64xf32> to vector<64x1xf32>
    %118 = tpu.reciprocal %117 : vector<64x1xf32> -> vector<64x1xf32>
    %119 = vector.broadcast %118 : vector<64x1xf32> to vector<64x128xf32>
    %120 = arith.mulf %115, %119 : vector<64x128xf32>
    %c64 = arith.constant 64 : index
    %c0_41 = arith.constant 0 : index
    %121 = vector.load %arg4[%c64, %c0_41] : memref<128x128xf32, #tpu.memory_space<vmem>>, vector<64x128xf32>
    tpu.vector_store %arg4[%c64, %c0_41], %120 {strides = array<i32>} : memref<128x128xf32, #tpu.memory_space<vmem>>, vector<64x128xf32>,
    return
  }
  func.func @transform_0(%arg0: i32) -> (i32, i32) {
    %c0_i32 = arith.constant 0 : i32
    %c0_i32_0 = arith.constant 0 : i32
    return %arg0, %c0_i32 : i32, i32
  }
  func.func @transform_1(%arg0: i32) -> (i32, i32) {
    %c0_i32 = arith.constant 0 : i32
    %c0_i32_0 = arith.constant 0 : i32
    %c0_i32_1 = arith.constant 0 : i32
    return %c0_i32, %c0_i32_0 : i32, i32
  }
  func.func @transform_2(%arg0: i32) -> (i32, i32) {
    %c0_i32 = arith.constant 0 : i32
    %c0_i32_0 = arith.constant 0 : i32
    %c0_i32_1 = arith.constant 0 : i32
    return %c0_i32, %c0_i32_0 : i32, i32
  }
  func.func @transform_3(%arg0: i32) -> (i32, i32) {
    %c0_i32 = arith.constant 0 : i32
    %c0_i32_0 = arith.constant 0 : i32
    return %arg0, %c0_i32 : i32, i32
  }
}

module attributes {stable_mosaic.version = 11 : i64} {
  func.func @_attention_kernel(%arg0: i32, %arg1: memref<128x128xbf16, #tpu.memory_space<vmem>>, %arg2: memref<128x128xbf16, #tpu.memory_space<vmem>>, %arg3: memref<1x128xf32, #tpu.memory_space<vmem>>, %arg4: memref<128x128xf32, #tpu.memory_space<vmem>>) attributes {dimension_semantics = [#tpu.dimension_semantics<parallel>], iteration_bounds = array<i64: 2>, scalar_prefetch = 0 : i64, scratch_operands = 0 : i64, tpu.core_type = #tpu.core_type<tc>, window_params = [{transform_indices = @transform_0, window_bounds = array<i64: 128, 128>}, {pipeline_mode = #tpu.pipeline_mode<synchronous>, transform_indices = @transform_1, window_bounds = array<i64: 128, 128>}, {pipeline_mode = #tpu.pipeline_mode<synchronous>, transform_indices = @transform_2, window_bounds = array<i64: 1, 128>}, {transform_indices = @transform_3, window_bounds = array<i64: 128, 128>}]} {
    %c0 = arith.constant 0 : index
    %c0_0 = arith.constant 0 : index
    %0 = vector.load %arg1[%c0, %c0_0] : memref<128x128xbf16, #tpu.memory_space<vmem>>, vector<128x128xbf16>
    %c0_1 = arith.constant 0 : index
    %c0_2 = arith.constant 0 : index
    %1 = vector.load %arg2[%c0_1, %c0_2] : memref<128x128xbf16, #tpu.memory_space<vmem>>, vector<128x128xbf16>
    %cst = arith.constant dense<0.000000e+00> : vector<128x128xf32>
    %2 = tpu.matmul %0, %1, %cst {dimension_numbers = #tpu.dot_dimension_numbers<[1], [0], [0], [1], [0, 0, 1, 1], [], []>} : vector<128x128xbf16>, vector<128x128xbf16>, vector<128x128xf32> -> vector<128x128xf32>
    %c0_3 = arith.constant 0 : index
    %c0_4 = arith.constant 0 : index
    %3 = vector.load %arg3[%c0_3, %c0_4] : memref<1x128xf32, #tpu.memory_space<vmem>>, vector<1x128xf32>
    %4 = vector.broadcast %3 : vector<1x128xf32> to vector<128x128xf32>
    %5 = arith.addf %2, %4 : vector<128x128xf32>
    %6 = vector.extract_strided_slice %5 {offsets = [0, 0], sizes = [64, 128], strides = [1, 1]} : vector<128x128xf32> to vector<64x128xf32>
    %7 = vector.extract_strided_slice %5 {offsets = [64, 0], sizes = [64, 128], strides = [1, 1]} : vector<128x128xf32> to vector<64x128xf32>
    %cst_5 = arith.constant dense<0xFF800000> : vector<64xf32>
    %8 = vector.multi_reduction <maximumf>, %6, %cst_5 [1] : vector<64x128xf32> to vector<64xf32>
    %9 = vector.shape_cast %8 : vector<64xf32> to vector<64x1xf32>
    %cst_6 = arith.constant dense<0xFF800000> : vector<64xf32>
    %10 = vector.multi_reduction <maximumf>, %7, %cst_6 [1] : vector<64x128xf32> to vector<64xf32>
    %11 = vector.shape_cast %10 : vector<64xf32> to vector<64x1xf32>
    %12 = vector.broadcast %9 : vector<64x1xf32> to vector<64x128xf32>
    %13 = arith.cmpf oge, %6, %12 : vector<64x128xf32>
    %cst_7 = arith.constant 0xFF800000 : f32
    %14 = vector.broadcast %cst_7 : f32 to vector<64x128xf32>
    %15 = arith.select %13, %14, %6 : vector<64x128xi1>, vector<64x128xf32>
    %16 = vector.broadcast %11 : vector<64x1xf32> to vector<64x128xf32>
    %17 = arith.cmpf oge, %7, %16 : vector<64x128xf32>
    %cst_8 = arith.constant 0xFF800000 : f32
    %18 = vector.broadcast %cst_8 : f32 to vector<64x128xf32>
    %19 = arith.select %17, %18, %7 : vector<64x128xi1>, vector<64x128xf32>
    %cst_9 = arith.constant dense<0xFF800000> : vector<64xf32>
    %20 = vector.multi_reduction <maximumf>, %15, %cst_9 [1] : vector<64x128xf32> to vector<64xf32>
    %21 = vector.shape_cast %20 : vector<64xf32> to vector<64x1xf32>
    %cst_10 = arith.constant dense<0xFF800000> : vector<64xf32>
    %22 = vector.multi_reduction <maximumf>, %19, %cst_10 [1] : vector<64x128xf32> to vector<64xf32>
    %23 = vector.shape_cast %22 : vector<64xf32> to vector<64x1xf32>
    %24 = vector.broadcast %21 : vector<64x1xf32> to vector<64x128xf32>
    %25 = arith.cmpf oge, %15, %24 : vector<64x128xf32>
    %cst_11 = arith.constant 0xFF800000 : f32
    %26 = vector.broadcast %cst_11 : f32 to vector<64x128xf32>
    %27 = arith.select %25, %26, %15 : vector<64x128xi1>, vector<64x128xf32>
    %28 = vector.broadcast %23 : vector<64x1xf32> to vector<64x128xf32>
    %29 = arith.cmpf oge, %19, %28 : vector<64x128xf32>
    %cst_12 = arith.constant 0xFF800000 : f32
    %30 = vector.broadcast %cst_12 : f32 to vector<64x128xf32>
    %31 = arith.select %29, %30, %19 : vector<64x128xi1>, vector<64x128xf32>
    %cst_13 = arith.constant dense<0xFF800000> : vector<64xf32>
    %32 = vector.multi_reduction <maximumf>, %27, %cst_13 [1] : vector<64x128xf32> to vector<64xf32>
    %33 = vector.shape_cast %32 : vector<64xf32> to vector<64x1xf32>
    %cst_14 = arith.constant dense<0xFF800000> : vector<64xf32>
    %34 = vector.multi_reduction <maximumf>, %31, %cst_14 [1] : vector<64x128xf32> to vector<64xf32>
    %35 = vector.shape_cast %34 : vector<64xf32> to vector<64x1xf32>
    %36 = vector.broadcast %33 : vector<64x1xf32> to vector<64x128xf32>
    %37 = arith.cmpf oge, %27, %36 : vector<64x128xf32>
    %cst_15 = arith.constant 0xFF800000 : f32
    %38 = vector.broadcast %cst_15 : f32 to vector<64x128xf32>
    %39 = arith.select %37, %38, %27 : vector<64x128xi1>, vector<64x128xf32>
    %40 = vector.broadcast %35 : vector<64x1xf32> to vector<64x128xf32>
    %41 = arith.cmpf oge, %31, %40 : vector<64x128xf32>
    %cst_16 = arith.constant 0xFF800000 : f32
    %42 = vector.broadcast %cst_16 : f32 to vector<64x128xf32>
    %43 = arith.select %41, %42, %31 : vector<64x128xi1>, vector<64x128xf32>
    %cst_17 = arith.constant dense<0xFF800000> : vector<64xf32>
    %44 = vector.multi_reduction <maximumf>, %39, %cst_17 [1] : vector<64x128xf32> to vector<64xf32>
    %45 = vector.shape_cast %44 : vector<64xf32> to vector<64x1xf32>
    %cst_18 = arith.constant dense<0xFF800000> : vector<64xf32>
    %46 = vector.multi_reduction <maximumf>, %43, %cst_18 [1] : vector<64x128xf32> to vector<64xf32>
    %47 = vector.shape_cast %46 : vector<64xf32> to vector<64x1xf32>
    %48 = vector.broadcast %45 : vector<64x1xf32> to vector<64x128xf32>
    %49 = arith.cmpf oge, %39, %48 : vector<64x128xf32>
    %cst_19 = arith.constant 0xFF800000 : f32
    %50 = vector.broadcast %cst_19 : f32 to vector<64x128xf32>
    %51 = arith.select %49, %50, %39 : vector<64x128xi1>, vector<64x128xf32>
    %52 = vector.broadcast %47 : vector<64x1xf32> to vector<64x128xf32>
    %53 = arith.cmpf oge, %43, %52 : vector<64x128xf32>
    %cst_20 = arith.constant 0xFF800000 : f32
    %54 = vector.broadcast %cst_20 : f32 to vector<64x128xf32>
    %55 = arith.select %53, %54, %43 : vector<64x128xi1>, vector<64x128xf32>
    %cst_21 = arith.constant dense<0xFF800000> : vector<64xf32>
    %56 = vector.multi_reduction <maximumf>, %51, %cst_21 [1] : vector<64x128xf32> to vector<64xf32>
    %57 = vector.shape_cast %56 : vector<64xf32> to vector<64x1xf32>
    %cst_22 = arith.constant dense<0xFF800000> : vector<64xf32>
    %58 = vector.multi_reduction <maximumf>, %55, %cst_22 [1] : vector<64x128xf32> to vector<64xf32>
    %59 = vector.shape_cast %58 : vector<64xf32> to vector<64x1xf32>
    %60 = vector.broadcast %57 : vector<64x1xf32> to vector<64x128xf32>
    %61 = arith.cmpf oge, %51, %60 : vector<64x128xf32>
    %cst_23 = arith.constant 0xFF800000 : f32
    %62 = vector.broadcast %cst_23 : f32 to vector<64x128xf32>
    %63 = arith.select %61, %62, %51 : vector<64x128xi1>, vector<64x128xf32>
    %64 = vector.broadcast %59 : vector<64x1xf32> to vector<64x128xf32>
    %65 = arith.cmpf oge, %55, %64 : vector<64x128xf32>
    %cst_24 = arith.constant 0xFF800000 : f32
    %66 = vector.broadcast %cst_24 : f32 to vector<64x128xf32>
    %67 = arith.select %65, %66, %55 : vector<64x128xi1>, vector<64x128xf32>
    %cst_25 = arith.constant dense<0xFF800000> : vector<64xf32>
    %68 = vector.multi_reduction <maximumf>, %63, %cst_25 [1] : vector<64x128xf32> to vector<64xf32>
    %69 = vector.shape_cast %68 : vector<64xf32> to vector<64x1xf32>
    %cst_26 = arith.constant dense<0xFF800000> : vector<64xf32>
    %70 = vector.multi_reduction <maximumf>, %67, %cst_26 [1] : vector<64x128xf32> to vector<64xf32>
    %71 = vector.shape_cast %70 : vector<64xf32> to vector<64x1xf32>
    %72 = vector.broadcast %69 : vector<64x1xf32> to vector<64x128xf32>
    %73 = arith.cmpf oge, %63, %72 : vector<64x128xf32>
    %cst_27 = arith.constant 0xFF800000 : f32
    %74 = vector.broadcast %cst_27 : f32 to vector<64x128xf32>
    %75 = arith.select %73, %74, %63 : vector<64x128xi1>, vector<64x128xf32>
    %76 = vector.broadcast %71 : vector<64x1xf32> to vector<64x128xf32>
    %77 = arith.cmpf oge, %67, %76 : vector<64x128xf32>
    %cst_28 = arith.constant 0xFF800000 : f32
    %78 = vector.broadcast %cst_28 : f32 to vector<64x128xf32>
    %79 = arith.select %77, %78, %67 : vector<64x128xi1>, vector<64x128xf32>
    %cst_29 = arith.constant dense<0xFF800000> : vector<64xf32>
    %80 = vector.multi_reduction <maximumf>, %75, %cst_29 [1] : vector<64x128xf32> to vector<64xf32>
    %81 = vector.shape_cast %80 : vector<64xf32> to vector<64x1xf32>
    %cst_30 = arith.constant dense<0xFF800000> : vector<64xf32>
    %82 = vector.multi_reduction <maximumf>, %79, %cst_30 [1] : vector<64x128xf32> to vector<64xf32>
    %83 = vector.shape_cast %82 : vector<64xf32> to vector<64x1xf32>
    %84 = vector.broadcast %81 : vector<64x1xf32> to vector<64x128xf32>
    %85 = arith.cmpf oge, %75, %84 : vector<64x128xf32>
    %cst_31 = arith.constant 0xFF800000 : f32
    %86 = vector.broadcast %cst_31 : f32 to vector<64x128xf32>
    %87 = arith.select %85, %86, %75 : vector<64x128xi1>, vector<64x128xf32>
    %88 = vector.broadcast %83 : vector<64x1xf32> to vector<64x128xf32>
    %89 = arith.cmpf oge, %79, %88 : vector<64x128xf32>
    %cst_32 = arith.constant 0xFF800000 : f32
    %90 = vector.broadcast %cst_32 : f32 to vector<64x128xf32>
    %91 = arith.select %89, %90, %79 : vector<64x128xi1>, vector<64x128xf32>
    %cst_33 = arith.constant dense<0xFF800000> : vector<64xf32>
    %92 = vector.multi_reduction <maximumf>, %87, %cst_33 [1] : vector<64x128xf32> to vector<64xf32>
    %93 = vector.shape_cast %92 : vector<64xf32> to vector<64x1xf32>
    %cst_34 = arith.constant dense<0xFF800000> : vector<64xf32>
    %94 = vector.multi_reduction <maximumf>, %91, %cst_34 [1] : vector<64x128xf32> to vector<64xf32>
    %95 = vector.shape_cast %94 : vector<64xf32> to vector<64x1xf32>
    %96 = vector.broadcast %93 : vector<64x1xf32> to vector<64x128xf32>
    %97 = arith.cmpf oge, %6, %96 : vector<64x128xf32>
    %98 = vector.broadcast %9 : vector<64x1xf32> to vector<64x128xf32>
    %99 = arith.subf %6, %98 : vector<64x128xf32>
    %100 = math.exp %99 : vector<64x128xf32>
    %cst_35 = arith.constant 0.000000e+00 : f32
    %101 = vector.broadcast %cst_35 : f32 to vector<64x128xf32>
    %102 = arith.select %97, %100, %101 : vector<64x128xi1>, vector<64x128xf32>
    %cst_36 = arith.constant dense<0.000000e+00> : vector<64xf32>
    %103 = vector.multi_reduction <add>, %102, %cst_36 [1] : vector<64x128xf32> to vector<64xf32>
    %104 = vector.shape_cast %103 : vector<64xf32> to vector<64x1xf32>
    %105 = tpu.reciprocal %104 : vector<64x1xf32> -> vector<64x1xf32>
    %106 = vector.broadcast %105 : vector<64x1xf32> to vector<64x128xf32>
    %107 = arith.mulf %102, %106 : vector<64x128xf32>
    %c0_37 = arith.constant 0 : index
    %c0_38 = arith.constant 0 : index
    %108 = vector.load %arg4[%c0_37, %c0_38] : memref<128x128xf32, #tpu.memory_space<vmem>>, vector<64x128xf32>
    tpu.vector_store %arg4[%c0_37, %c0_38], %107 {strides = array<i32>} : memref<128x128xf32, #tpu.memory_space<vmem>>, vector<64x128xf32>,
    %109 = vector.broadcast %95 : vector<64x1xf32> to vector<64x128xf32>
    %110 = arith.cmpf oge, %7, %109 : vector<64x128xf32>
    %111 = vector.broadcast %11 : vector<64x1xf32> to vector<64x128xf32>
    %112 = arith.subf %7, %111 : vector<64x128xf32>
    %113 = math.exp %112 : vector<64x128xf32>
    %cst_39 = arith.constant 0.000000e+00 : f32
    %114 = vector.broadcast %cst_39 : f32 to vector<64x128xf32>
    %115 = arith.select %110, %113, %114 : vector<64x128xi1>, vector<64x128xf32>
    %cst_40 = arith.constant dense<0.000000e+00> : vector<64xf32>
    %116 = vector.multi_reduction <add>, %115, %cst_40 [1] : vector<64x128xf32> to vector<64xf32>
    %117 = vector.shape_cast %116 : vector<64xf32> to vector<64x1xf32>
    %118 = tpu.reciprocal %117 : vector<64x1xf32> -> vector<64x1xf32>
    %119 = vector.broadcast %118 : vector<64x1xf32> to vector<64x128xf32>
    %120 = arith.mulf %115, %119 : vector<64x128xf32>
    %c64 = arith.constant 64 : index
    %c0_41 = arith.constant 0 : index
    %121 = vector.load %arg4[%c64, %c0_41] : memref<128x128xf32, #tpu.memory_space<vmem>>, vector<64x128xf32>
    tpu.vector_store %arg4[%c64, %c0_41], %120 {strides = array<i32>} : memref<128x128xf32, #tpu.memory_space<vmem>>, vector<64x128xf32>,
    return
  }
  func.func @transform_0(%arg0: i32) -> (i32, i32) {
    %c0_i32 = arith.constant 0 : i32
    %c0_i32_0 = arith.constant 0 : i32
    return %arg0, %c0_i32 : i32, i32
  }
  func.func @transform_1(%arg0: i32) -> (i32, i32) {
    %c0_i32 = arith.constant 0 : i32
    %c0_i32_0 = arith.constant 0 : i32
    %c0_i32_1 = arith.constant 0 : i32
    return %c0_i32, %c0_i32_0 : i32, i32
  }
  func.func @transform_2(%arg0: i32) -> (i32, i32) {
    %c0_i32 = arith.constant 0 : i32
    %c0_i32_0 = arith.constant 0 : i32
    %c0_i32_1 = arith.constant 0 : i32
    return %c0_i32, %c0_i32_0 : i32, i32
  }
  func.func @transform_3(%arg0: i32) -> (i32, i32) {
    %c0_i32 = arith.constant 0 : i32
    %c0_i32_0 = arith.constant 0 : i32
    return %arg0, %c0_i32 : i32, i32
  }
}

</mosaic_0001>

<llo_original>
// kernel: tpu_custom_call.1
$region0: #{tpu_custom_call.1}
  #allocation0 [shape = 'u32[]', space=smem, size = 0x4, offset = 0x4, fixed_abs, tag = 'smem constant byte address 0x4 - core index']
  #allocation1 [shape = 'u32[144,128]{1,0:T(1,128)}', space=vmem, size = 0x12000, scoped, tag = 'internal scratch']
  %s0 = inlined_call_operand.hbm [shape: bf16[256,128], index: 0, kind: input, shape index: {}]
  %s1 = inlined_call_operand.hbm [shape: bf16[128,128], index: 1, kind: input, shape index: {}]
  %s2 = inlined_call_operand.vmem [shape: f32[1,128], index: 2, kind: input, shape index: {}]
  %s3 = inlined_call_operand.hbm [shape: f32[256,128], index: 3, kind: output, shape index: {}]
  %s4 = sld [smem:[#allocation0]]
  $region53: #{tpu_custom_call.1} parent=0
    _
  %s6 = ssub.s32 1, %s4
  %s7 = scalar_select 0, %s6, %s4
  $region1: #{tpu_custom_call.1} parent=0
    #allocation2 [shape = 'u8[65536]{0}', space=vmem, size = 0x10000, scoped, tag = 'input window, operand 0']
    #allocation3 [shape = 's32[2]{0}', space=sflag, size = 0x8, scoped, tag = 'scoped memory for tpu_custom_call.1']
    #allocation4 [shape = 's32[2]{0}', space=sflag, size = 0x8, scoped, tag = 'scoped memory for tpu_custom_call.1']
    #allocation5 [shape = 'u8[32768]{0}', space=vmem, size = 0x8000, scoped, tag = 'input window, operand 1, single buffered']
    #allocation6 [shape = 's32[1]{0}', space=sflag, size = 0x4, scoped, tag = 'scoped memory for tpu_custom_call.1']
    #allocation7 [shape = 'u8[131072]{0}', space=vmem, size = 0x20000, scoped, tag = 'output window, operand 0']
    %8 = vsyncpa [#allocation3], 0
    %s9 = scalar_lea.sflag [#allocation3], 1
    %10 = vsyncpa %s9, 0
    %11 = vsyncpa [#allocation6], 0
    %12 = vsyncpa [#allocation4], 0
    %s13 = scalar_lea.sflag [#allocation4], 1
    %14 = vsyncpa %s13, 0
    loop: start=0, step=1, limit=4
    $region2: #{tpu_custom_call.1} parent=1 // loop_pre_header
      _
    $region3: #{tpu_custom_call.1} parent=1 // loop_header
      %s16 = sphi 0, %s20
      %p17 = scmp.ge.s32.totalorder %s16, 4
      %s26 = sphi 0, %s28
      %s29 = sphi 0, %s26
      %s30 = sphi 0, %s29
      %s46 = sphi 0, %s30
      %s50 = sphi 0, %s50
      %s52 = sphi 0, %s50
      %s53 = sphi 0, %s52
      %s67 = sphi 0, %s53
      %s71 = sphi 0, %s71
      %s73 = sphi 0, %s71
      %s74 = sphi 0, %s73
      %s88 = sphi 0, %s74
      %s94 = sphi 0, %s96
      %s97 = sphi 0, %s94
      %s98 = sphi 0, %s97
      %s114 = sphi 0, %s98
    $region4: #{tpu_custom_call.1} parent=1 // loop_header_branch
      %19 = sbr.rel (%p17) target = $region8
    $region5: #{tpu_custom_call.1} parent=1 // loop_body
      %s21 = ssub.s32 %s16, 1
      %s22 = ssub.s32 %s16, 2
      %s23 = sadd.s32 %s16, 1
      %s24 = ssub.s32 %s16, %s23
      %p25 = scmp.eq.s32.totalorder %s24, 0
      %s27 = sadd.s32 %s26, 1
      %s28 = scalar_select %p25, %s26, %s27
      %p31 = pneg %p25
      %p32 = scmp.eq.s32.totalorder %s16, 1
      %p33 = por %p31, %p32
      %p34 = scmp.ne.s32.totalorder %s26, %s29
      %p35 = scmp.eq.s32.totalorder %s16, 0
      %p36 = por %p34, %p35
      %p37 = scmp.ne.s32.totalorder %s26, %s29
      %p38 = scmp.eq.s32.totalorder %s21, 1
      %p39 = por %p37, %p38
      %p40 = scmp.ne.s32.totalorder %s29, %s30
      %p41 = scmp.eq.s32.totalorder %s21, 0
      %p42 = por %p40, %p41
      %p43 = scmp.ne.s32.totalorder %s29, %s30
      %p44 = scmp.eq.s32.totalorder %s22, 1
      %p45 = por %p43, %p44
      %p47 = scmp.ne.s32.totalorder %s30, %s46
      %p48 = scmp.eq.s32.totalorder %s22, 0
      %p49 = por %p47, %p48
      %s51 = sadd.s32 %s50, 1
      %p54 = scmp.eq.s32.totalorder %s16, 1
      %p55 = scmp.ne.s32.totalorder %s50, %s52
      %p56 = scmp.eq.s32.totalorder %s16, 0
      %p57 = por %p55, %p56
      %p58 = scmp.ne.s32.totalorder %s50, %s52
      %p59 = scmp.eq.s32.totalorder %s21, 1
      %p60 = por %p58, %p59
      %p61 = scmp.ne.s32.totalorder %s52, %s53
      %p62 = scmp.eq.s32.totalorder %s21, 0
      %p63 = por %p61, %p62
      %p64 = scmp.ne.s32.totalorder %s52, %s53
      %p65 = scmp.eq.s32.totalorder %s22, 1
      %p66 = por %p64, %p65
      %p68 = scmp.ne.s32.totalorder %s53, %s67
      %p69 = scmp.eq.s32.totalorder %s22, 0
      %p70 = por %p68, %p69
      %s72 = sadd.s32 %s71, 1
      %p75 = scmp.eq.s32.totalorder %s16, 1
      %p76 = scmp.ne.s32.totalorder %s71, %s73
      %p77 = scmp.eq.s32.totalorder %s16, 0
      %p78 = por %p76, %p77
      %p79 = scmp.ne.s32.totalorder %s71, %s73
      %p80 = scmp.eq.s32.totalorder %s21, 1
      %p81 = por %p79, %p80
      %p82 = scmp.ne.s32.totalorder %s73, %s74
      %p83 = scmp.eq.s32.totalorder %s21, 0
      %p84 = por %p82, %p83
      %p85 = scmp.ne.s32.totalorder %s73, %s74
      %p86 = scmp.eq.s32.totalorder %s22, 1
      %p87 = por %p85, %p86
      %p89 = scmp.ne.s32.totalorder %s74, %s88
      %p90 = scmp.eq.s32.totalorder %s22, 0
      %p91 = por %p89, %p90
      %s92 = ssub.s32 %s16, %s23
      %p93 = scmp.eq.s32.totalorder %s92, 0
      %s95 = sadd.s32 %s94, 1
      %s96 = scalar_select %p93, %s94, %s95
      %p99 = pneg %p93
      %p100 = scmp.eq.s32.totalorder %s16, 1
      %p101 = por %p99, %p100
      %p102 = scmp.ne.s32.totalorder %s94, %s97
      %p103 = scmp.eq.s32.totalorder %s16, 0
      %p104 = por %p102, %p103
      %p105 = scmp.ne.s32.totalorder %s94, %s97
      %p106 = scmp.eq.s32.totalorder %s21, 1
      %p107 = por %p105, %p106
      %p108 = scmp.ne.s32.totalorder %s97, %s98
      %p109 = scmp.eq.s32.totalorder %s21, 0
      %p110 = por %p108, %p109
      %p111 = scmp.ne.s32.totalorder %s97, %s98
      %p112 = scmp.eq.s32.totalorder %s22, 1
      %p113 = por %p111, %p112
      %p115 = scmp.ne.s32.totalorder %s98, %s114
      %p116 = scmp.eq.s32.totalorder %s22, 0
      %p117 = por %p115, %p116
      %p118 = scmp.le.s32.totalorder 1, %s16
      %p119 = scmp.lt.s32.totalorder %s16, 3
      %p120 = pnand %p118, %p119
      %p121 = pneg %p120
      // Predicated region
      $region9: #{tpu_custom_call.1} parent=5 // pred_check
        _
      $region10: #{tpu_custom_call.1} parent=5 // pred_check_branch
        %123 = sbr.rel (%p120) target = $region12
      $region11: #{tpu_custom_call.1} parent=5 // pred_region
        %s124 = ssub.s32 %s16, 1
        // Predicated region
        $region13: #{tpu_custom_call.1} parent=11 // pred_check
          %p125 = pneg %p63
        $region14: #{tpu_custom_call.1} parent=11 // pred_check_branch
          %127 = sbr.rel (%p125) target = $region16
        $region15: #{tpu_custom_call.1} parent=11 // pred_region
          %s129 = ssub.s32 1024, 1024
          %130 = vsyncadd [#allocation6], %s129
          %s131 = sshll.u32 [#allocation5], 4
          %s132 = int_to_ptr.vmem [resolvable:$true] %s131
          %137 = dma.hbm_to_vmem [thread:$0]  %s1, 1024, %s132, [#allocation6], 64, 64, 4
        $region16: #{tpu_custom_call.1} parent=11 // pred_fallthru
          _
        // Predicated region
        $region17: #{tpu_custom_call.1} parent=11 // pred_check
          %p138 = pneg %p84
        $region18: #{tpu_custom_call.1} parent=11 // pred_check_branch
          %140 = sbr.rel (%p138) target = $region20
        $region19: #{tpu_custom_call.1} parent=11 // pred_region
          _
        $region20: #{tpu_custom_call.1} parent=11 // pred_fallthru
          _
      $region12: #{tpu_custom_call.1} parent=5 // pred_fallthru
        _
      %p141 = scmp.lt.s32.totalorder %s16, 2
      // Predicated region
      $region21: #{tpu_custom_call.1} parent=5 // pred_check
        %p142 = pneg %p141
      $region22: #{tpu_custom_call.1} parent=5 // pred_check_branch
        %144 = sbr.rel (%p142) target = $region24
      $region23: #{tpu_custom_call.1} parent=5 // pred_region
        // Predicated region
        $region25: #{tpu_custom_call.1} parent=23 // pred_check
          %p145 = pneg %p36
        $region26: #{tpu_custom_call.1} parent=23 // pred_check_branch
          %147 = sbr.rel (%p145) target = $region28
        $region27: #{tpu_custom_call.1} parent=23 // pred_region
          %s148 = sand.u32 %s26, 1
          %s149 = scalar_lea.sflag [#allocation3], %s148
          %s150 = sand.u32 %s26, 1
          %s151 = smul.addr %s150, 64
          %s152 = scalar_lea.vmem [#allocation2], %s151
          %s153 = smul.u32 16, %s16
          %s155 = ssub.s32 1024, 1024
          %156 = vsyncadd %s149, %s155
          %s157 = smul.addr %s153, 64
          %s158 = scalar_lea.hbm %s0, %s157
          %s159 = sshll.u32 %s152, 4
          %s160 = int_to_ptr.vmem [resolvable:$true] %s159
          %165 = dma.hbm_to_vmem [thread:$0]  %s158, 1024, %s160, %s149, 64, 64, 4
        $region28: #{tpu_custom_call.1} parent=23 // pred_fallthru
          _
      $region24: #{tpu_custom_call.1} parent=5 // pred_fallthru
        _
      %p166 = scmp.le.s32.totalorder 1, %s16
      %p167 = scmp.lt.s32.totalorder %s16, 3
      %p168 = pnand %p166, %p167
      %p169 = pneg %p168
      // Predicated region
      $region29: #{tpu_custom_call.1} parent=5 // pred_check
        _
      $region30: #{tpu_custom_call.1} parent=5 // pred_check_branch
        %171 = sbr.rel (%p168) target = $region32
      $region31: #{tpu_custom_call.1} parent=5 // pred_region
        %s172 = ssub.s32 %s16, 1
        %s173 = sand.u32 %s29, 1
        %s174 = scalar_lea.sflag [#allocation3], %s173
        %s175 = sand.u32 %s29, 1
        %s176 = smul.addr %s175, 64
        %s177 = scalar_lea.vmem [#allocation2], %s176
        // Predicated region
        $region33: #{tpu_custom_call.1} parent=31 // pred_check
          %p178 = pneg %p42
        $region34: #{tpu_custom_call.1} parent=31 // pred_check_branch
          %180 = sbr.rel (%p178) target = $region36
        $region35: #{tpu_custom_call.1} parent=31 // pred_region
          %181 = dma.done %s174, 1024
        $region36: #{tpu_custom_call.1} parent=31 // pred_fallthru
          _
        // Predicated region
        $region37: #{tpu_custom_call.1} parent=31 // pred_check
          %p182 = pneg %p63
        $region38: #{tpu_custom_call.1} parent=31 // pred_check_branch
          %184 = sbr.rel (%p182) target = $region40
        $region39: #{tpu_custom_call.1} parent=31 // pred_region
          %185 = dma.done [#allocation6], 1024
        $region40: #{tpu_custom_call.1} parent=31 // pred_fallthru
          _
        %s186 = sand.u32 %s29, 1
        %s187 = scalar_lea.sflag [#allocation3], %s186
        %s188 = sand.u32 %s29, 1
        %s189 = smul.addr %s188, 64
        %s190 = scalar_lea.vmem [#allocation2], %s189
        %p191 = pneg %p42
        %p192 = pneg %p39
        %p193 = pneg %p63
        %p194 = pneg %p60
        %p195 = pneg %p84
        %p196 = pneg %p81
        %p197 = pneg %p110
        %p198 = pneg %p107
        %s199 = sand.u32 %s97, 1
        %s200 = scalar_lea.sflag [#allocation4], %s199
        %s201 = sand.u32 %s97, 1
        %s202 = smul.addr %s201, 128
        %s203 = scalar_lea.vmem [#allocation7], %s202
        %s204 = smul.u32 16, %s21
        %s205 = smul.u32 16, %s21
        %v207 = vld [vmem:[%s177] sm:$0xf]
        %v208 = vld [vmem:[%s177 + $0x4] sm:$0xf]
        %v209 = vld [vmem:[%s177 + $0x8] sm:$0xf]
        %v210 = vld [vmem:[%s177 + $0xc] sm:$0xf]
        %v211 = vld [vmem:[%s177 + $0x10] sm:$0xf]
        %v212 = vld [vmem:[%s177 + $0x14] sm:$0xf]
        %v213 = vld [vmem:[%s177 + $0x18] sm:$0xf]
        %v214 = vld [vmem:[%s177 + $0x1c] sm:$0xf]
        %v215 = vld [vmem:[%s177 + $0x20] sm:$0xf]
        %v216 = vld [vmem:[%s177 + $0x24] sm:$0xf]
        %v217 = vld [vmem:[%s177 + $0x28] sm:$0xf]
        %v218 = vld [vmem:[%s177 + $0x2c] sm:$0xf]
        %v219 = vld [vmem:[%s177 + $0x30] sm:$0xf]
        %v220 = vld [vmem:[%s177 + $0x34] sm:$0xf]
        %v221 = vld [vmem:[%s177 + $0x38] sm:$0xf]
        %v222 = vld [vmem:[%s177 + $0x3c] sm:$0xf]
        %v223 = vld [vmem:[#allocation5] sm:$0xf]
        %v224 = vld [vmem:[#allocation5 + $0x4] sm:$0xf]
        %v225 = vld [vmem:[#allocation5 + $0x8] sm:$0xf]
        %v226 = vld [vmem:[#allocation5 + $0xc] sm:$0xf]
        %v227 = vld [vmem:[#allocation5 + $0x10] sm:$0xf]
        %v228 = vld [vmem:[#allocation5 + $0x14] sm:$0xf]
        %v229 = vld [vmem:[#allocation5 + $0x18] sm:$0xf]
        %v230 = vld [vmem:[#allocation5 + $0x1c] sm:$0xf]
        %v231 = vld [vmem:[#allocation5 + $0x20] sm:$0xf]
        %v232 = vld [vmem:[#allocation5 + $0x24] sm:$0xf]
        %v233 = vld [vmem:[#allocation5 + $0x28] sm:$0xf]
        %v234 = vld [vmem:[#allocation5 + $0x2c] sm:$0xf]
        %v235 = vld [vmem:[#allocation5 + $0x30] sm:$0xf]
        %v236 = vld [vmem:[#allocation5 + $0x34] sm:$0xf]
        %v237 = vld [vmem:[#allocation5 + $0x38] sm:$0xf]
        %v238 = vld [vmem:[#allocation5 + $0x3c] sm:$0xf]
        %v239 = vld [vmem:[%s2] sm:$0x1]
        %v241 = vlaneseq
        %v242 = vshrl.u32 %v241, 7
        %v243 = vsub.s32 0, %v242
        %v244 = vrot.slane %v239, %v243
        %v262 = vunpack.c.l.b16 %v207
        %v263 = vunpack.c.l.b16 %v208
        %v264 = vunpack.c.l.b16 %v209
        %v265 = vunpack.c.l.b16 %v210
        %v266 = vunpack.c.l.b16 %v211
        %v267 = vunpack.c.l.b16 %v212
        %v268 = vunpack.c.l.b16 %v213
        %v269 = vunpack.c.l.b16 %v214
        %v270 = vunpack.c.l.b16 %v215
        %v271 = vunpack.c.l.b16 %v216
        %v272 = vunpack.c.l.b16 %v217
        %v273 = vunpack.c.l.b16 %v218
        %v274 = vunpack.c.l.b16 %v219
        %v275 = vunpack.c.l.b16 %v220
        %v276 = vunpack.c.l.b16 %v221
        %v277 = vunpack.c.l.b16 %v222
        %v278 = vpack.c.b16 %v263, %v262
        %v279 = vpack.c.b16 %v265, %v264
        %v280 = vpack.c.b16 %v267, %v266
        %v281 = vpack.c.b16 %v269, %v268
        %v282 = vpack.c.b16 %v271, %v270
        %v283 = vpack.c.b16 %v273, %v272
        %v284 = vpack.c.b16 %v275, %v274
        %v285 = vpack.c.b16 %v277, %v276
        %v310 = vunpack.c.l.b16 %v223
        %v311 = vunpack.c.l.b16 %v224
        %v312 = vunpack.c.l.b16 %v225
        %v313 = vunpack.c.l.b16 %v226
        %v314 = vunpack.c.l.b16 %v227
        %v315 = vunpack.c.l.b16 %v228
        %v316 = vunpack.c.l.b16 %v229
        %v317 = vunpack.c.l.b16 %v230
        %v318 = vunpack.c.l.b16 %v231
        %v319 = vunpack.c.l.b16 %v232
        %v320 = vunpack.c.l.b16 %v233
        %v321 = vunpack.c.l.b16 %v234
        %v322 = vunpack.c.l.b16 %v235
        %v323 = vunpack.c.l.b16 %v236
        %v324 = vunpack.c.l.b16 %v237
        %v325 = vunpack.c.l.b16 %v238
        %v326 = vpack.c.b16 %v311, %v310
        %v327 = vpack.c.b16 %v313, %v312
        %v328 = vpack.c.b16 %v315, %v314
        %v329 = vpack.c.b16 %v317, %v316
        %v330 = vpack.c.b16 %v319, %v318
        %v331 = vpack.c.b16 %v321, %v320
        %v332 = vpack.c.b16 %v323, %v322
        %v333 = vpack.c.b16 %v325, %v324
        %342 = vmatprep.subr.bf16.mxu0 0
        %343 = vmatpush1.bf16.msra.mxu0 %v333
        %344 = vmatprep.subr.bf16.mxu0 0
        %345 = vmatpush1.bf16.msra.mxu0 %v332
        %346 = vmatprep.subr.bf16.mxu0 0
        %347 = vmatpush1.bf16.msra.mxu0 %v331
        %348 = vmatprep.subr.bf16.mxu0 0
        %349 = vmatpush1.bf16.msra.mxu0 %v330
        %350 = vmatprep.subr.bf16.mxu0 0
        %351 = vmatpush1.bf16.msra.mxu0 %v329
        %352 = vmatprep.subr.bf16.mxu0 0
        %353 = vmatpush1.bf16.msra.mxu0 %v328
        %354 = vmatprep.subr.bf16.mxu0 0
        %355 = vmatpush1.bf16.msra.mxu0 %v327
        %356 = vmatprep.subr.bf16.mxu0 0
        %357 = vmatpush1.bf16.msra.mxu0 %v326
        %358 = vmatprep.subr.bf16.mxu0 0
        %359 = vmatpush2.bf16.msra.mxu0 0
        %360 = vmatprep.subr.bf16.mxu0 0
        %361 = vmatpush2.bf16.msra.mxu0 0
        %362 = vmatprep.subr.bf16.mxu0 0
        %363 = vmatpush2.bf16.msra.mxu0 0
        %364 = vmatprep.subr.bf16.mxu0 0
        %365 = vmatpush2.bf16.msra.mxu0 0
        %366 = vmatprep.subr.bf16.mxu0 0
        %367 = vmatpush2.bf16.msra.mxu0 0
        %368 = vmatprep.subr.bf16.mxu0 0
        %369 = vmatpush2.bf16.msra.mxu0 0
        %370 = vmatprep.subr.bf16.mxu0 0
        %371 = vmatpush2.bf16.msra.mxu0 0
        %372 = vmatprep.subr.bf16.mxu0 0
        %373 = vmatpush2.bf16.msra.mxu0 0
        %374 = vmatprep.mubr.bf16.mxu0 0
        %375 = vmatmul.mubr.bf16.gmra.mxu0 %v278
        %v376 = vpop.f32.mrf.mxu0
        %v377 = vadd.f32 %v244, %v376
        %v378 = vpop.f32.mrf.mxu0
        %v379 = vpop.f32.mrf.mxu0
        %v380 = vadd.f32 %v244, %v379
        %v381 = vpop.f32.mrf.mxu0
        %382 = vmatprep.mubr.bf16.mxu0 0
        %383 = vmatmul.mubr.bf16.gmra.mxu0 %v279
        %v384 = vpop.f32.mrf.mxu0
        %v385 = vadd.f32 %v244, %v384
        %v386 = vpop.f32.mrf.mxu0
        %v387 = vpop.f32.mrf.mxu0
        %v388 = vadd.f32 %v244, %v387
        %v389 = vpop.f32.mrf.mxu0
        %390 = vmatprep.mubr.bf16.mxu0 0
        %391 = vmatmul.mubr.bf16.gmra.mxu0 %v280
        %v392 = vpop.f32.mrf.mxu0
        %v393 = vadd.f32 %v244, %v392
        %v394 = vpop.f32.mrf.mxu0
        %v395 = vpop.f32.mrf.mxu0
        %v396 = vadd.f32 %v244, %v395
        %v397 = vpop.f32.mrf.mxu0
        %398 = vmatprep.mubr.bf16.mxu0 0
        %399 = vmatmul.mubr.bf16.gmra.mxu0 %v281
        %v400 = vpop.f32.mrf.mxu0
        %v401 = vadd.f32 %v244, %v400
        %v402 = vpop.f32.mrf.mxu0
        %v403 = vpop.f32.mrf.mxu0
        %v404 = vadd.f32 %v244, %v403
        %v405 = vpop.f32.mrf.mxu0
        %406 = vmatprep.mubr.bf16.mxu0 0
        %407 = vmatmul.mubr.bf16.gmra.mxu0 %v282
        %v408 = vpop.f32.mrf.mxu0
        %v409 = vadd.f32 %v244, %v408
        %v410 = vpop.f32.mrf.mxu0
        %v411 = vpop.f32.mrf.mxu0
        %v412 = vadd.f32 %v244, %v411
        %v413 = vpop.f32.mrf.mxu0
        %414 = vmatprep.mubr.bf16.mxu0 0
        %415 = vmatmul.mubr.bf16.gmra.mxu0 %v283
        %v416 = vpop.f32.mrf.mxu0
        %v417 = vadd.f32 %v244, %v416
        %v418 = vpop.f32.mrf.mxu0
        %v419 = vpop.f32.mrf.mxu0
        %v420 = vadd.f32 %v244, %v419
        %v421 = vpop.f32.mrf.mxu0
        %422 = vmatprep.mubr.bf16.mxu0 0
        %423 = vmatmul.mubr.bf16.gmra.mxu0 %v284
        %v424 = vpop.f32.mrf.mxu0
        %v425 = vadd.f32 %v244, %v424
        %v426 = vpop.f32.mrf.mxu0
        %v427 = vpop.f32.mrf.mxu0
        %v428 = vadd.f32 %v244, %v427
        %v429 = vpop.f32.mrf.mxu0
        %430 = vmatprep.mubr.bf16.mxu0 0
        %431 = vmatmul.mubr.bf16.gmra.mxu0 %v285
        %v432 = vpop.f32.mrf.mxu0
        %v433 = vadd.f32 %v244, %v432
        %v434 = vpop.f32.mrf.mxu0
        %v435 = vpop.f32.mrf.mxu0
        %v436 = vadd.f32 %v244, %v435
        %v437 = vpop.f32.mrf.mxu0
        %438 = vdwg.mxu0
        %439 = vmax.xlane.f32.xlu0 %v377
        %v440 = vpop.xlane.xlu0 %439
        %441 = vmax.xlane.f32.xlu0 %v380
        %v442 = vpop.xlane.xlu0 %441
        %443 = vmax.xlane.f32.xlu0 %v385
        %v444 = vpop.xlane.xlu0 %443
        %445 = vmax.xlane.f32.xlu0 %v388
        %v446 = vpop.xlane.xlu0 %445
        %447 = vmax.xlane.f32.xlu0 %v393
        %v448 = vpop.xlane.xlu0 %447
        %449 = vmax.xlane.f32.xlu0 %v396
        %v450 = vpop.xlane.xlu0 %449
        %451 = vmax.xlane.f32.xlu0 %v401
        %v452 = vpop.xlane.xlu0 %451
        %453 = vmax.xlane.f32.xlu0 %v404
        %v454 = vpop.xlane.xlu0 %453
        %455 = vmax.xlane.f32.xlu0 %v409
        %v456 = vpop.xlane.xlu0 %455
        %457 = vmax.xlane.f32.xlu0 %v412
        %v458 = vpop.xlane.xlu0 %457
        %459 = vmax.xlane.f32.xlu0 %v417
        %v460 = vpop.xlane.xlu0 %459
        %461 = vmax.xlane.f32.xlu0 %v420
        %v462 = vpop.xlane.xlu0 %461
        %463 = vmax.xlane.f32.xlu0 %v425
        %v464 = vpop.xlane.xlu0 %463
        %465 = vmax.xlane.f32.xlu0 %v428
        %v466 = vpop.xlane.xlu0 %465
        %467 = vmax.xlane.f32.xlu0 %v433
        %v468 = vpop.xlane.xlu0 %467
        %469 = vmax.xlane.f32.xlu0 %v436
        %v470 = vpop.xlane.xlu0 %469
        %vm471 = vcmp.ge.f32.partialorder %v377, %v440
        %vm472 = vcmp.ge.f32.partialorder %v380, %v442
        %vm473 = vcmp.ge.f32.partialorder %v385, %v444
        %vm474 = vcmp.ge.f32.partialorder %v388, %v446
        %vm475 = vcmp.ge.f32.partialorder %v393, %v448
        %vm476 = vcmp.ge.f32.partialorder %v396, %v450
        %vm477 = vcmp.ge.f32.partialorder %v401, %v452
        %vm478 = vcmp.ge.f32.partialorder %v404, %v454
        %v479 = vsel %vm471, -inf, %v377
        %v480 = vsel %vm472, -inf, %v380
        %v481 = vsel %vm473, -inf, %v385
        %v482 = vsel %vm474, -inf, %v388
        %v483 = vsel %vm475, -inf, %v393
        %v484 = vsel %vm476, -inf, %v396
        %v485 = vsel %vm477, -inf, %v401
        %v486 = vsel %vm478, -inf, %v404
        %vm487 = vcmp.ge.f32.partialorder %v409, %v456
        %vm488 = vcmp.ge.f32.partialorder %v412, %v458
        %vm489 = vcmp.ge.f32.partialorder %v417, %v460
        %vm490 = vcmp.ge.f32.partialorder %v420, %v462
        %vm491 = vcmp.ge.f32.partialorder %v425, %v464
        %vm492 = vcmp.ge.f32.partialorder %v428, %v466
        %vm493 = vcmp.ge.f32.partialorder %v433, %v468
        %vm494 = vcmp.ge.f32.partialorder %v436, %v470
        %v495 = vsel %vm487, -inf, %v409
        %v496 = vsel %vm488, -inf, %v412
        %v497 = vsel %vm489, -inf, %v417
        %v498 = vsel %vm490, -inf, %v420
        %v499 = vsel %vm491, -inf, %v425
        %v500 = vsel %vm492, -inf, %v428
        %v501 = vsel %vm493, -inf, %v433
        %v502 = vsel %vm494, -inf, %v436
        %503 = vmax.xlane.f32.xlu0 %v479
        %v504 = vpop.xlane.xlu0 %503
        %505 = vmax.xlane.f32.xlu0 %v480
        %v506 = vpop.xlane.xlu0 %505
        %507 = vmax.xlane.f32.xlu0 %v481
        %v508 = vpop.xlane.xlu0 %507
        %509 = vmax.xlane.f32.xlu0 %v482
        %v510 = vpop.xlane.xlu0 %509
        %511 = vmax.xlane.f32.xlu0 %v483
        %v512 = vpop.xlane.xlu0 %511
        %513 = vmax.xlane.f32.xlu0 %v484
        %v514 = vpop.xlane.xlu0 %513
        %515 = vmax.xlane.f32.xlu0 %v485
        %v516 = vpop.xlane.xlu0 %515
        %517 = vmax.xlane.f32.xlu0 %v486
        %v518 = vpop.xlane.xlu0 %517
        %519 = vmax.xlane.f32.xlu0 %v495
        %v520 = vpop.xlane.xlu0 %519
        %521 = vmax.xlane.f32.xlu0 %v496
        %v522 = vpop.xlane.xlu0 %521
        %523 = vmax.xlane.f32.xlu0 %v497
        %v524 = vpop.xlane.xlu0 %523
        %525 = vmax.xlane.f32.xlu0 %v498
        %v526 = vpop.xlane.xlu0 %525
        %527 = vmax.xlane.f32.xlu0 %v499
        %v528 = vpop.xlane.xlu0 %527
        %529 = vmax.xlane.f32.xlu0 %v500
        %v530 = vpop.xlane.xlu0 %529
        %531 = vmax.xlane.f32.xlu0 %v501
        %v532 = vpop.xlane.xlu0 %531
        %533 = vmax.xlane.f32.xlu0 %v502
        %v534 = vpop.xlane.xlu0 %533
        %vm535 = vcmp.ge.f32.partialorder %v479, %v504
        %vm536 = vcmp.ge.f32.partialorder %v480, %v506
        %vm537 = vcmp.ge.f32.partialorder %v481, %v508
        %vm538 = vcmp.ge.f32.partialorder %v482, %v510
        %vm539 = vcmp.ge.f32.partialorder %v483, %v512
        %vm540 = vcmp.ge.f32.partialorder %v484, %v514
        %vm541 = vcmp.ge.f32.partialorder %v485, %v516
        %vm542 = vcmp.ge.f32.partialorder %v486, %v518
        %v543 = vsel %vm535, -inf, %v479
        %v544 = vsel %vm536, -inf, %v480
        %v545 = vsel %vm537, -inf, %v481
        %v546 = vsel %vm538, -inf, %v482
        %v547 = vsel %vm539, -inf, %v483
        %v548 = vsel %vm540, -inf, %v484
        %v549 = vsel %vm541, -inf, %v485
        %v550 = vsel %vm542, -inf, %v486
        %vm551 = vcmp.ge.f32.partialorder %v495, %v520
        %vm552 = vcmp.ge.f32.partialorder %v496, %v522
        %vm553 = vcmp.ge.f32.partialorder %v497, %v524
        %vm554 = vcmp.ge.f32.partialorder %v498, %v526
        %vm555 = vcmp.ge.f32.partialorder %v499, %v528
        %vm556 = vcmp.ge.f32.partialorder %v500, %v530
        %vm557 = vcmp.ge.f32.partialorder %v501, %v532
        %vm558 = vcmp.ge.f32.partialorder %v502, %v534
        %v559 = vsel %vm551, -inf, %v495
        %v560 = vsel %vm552, -inf, %v496
        %v561 = vsel %vm553, -inf, %v497
        %v562 = vsel %vm554, -inf, %v498
        %v563 = vsel %vm555, -inf, %v499
        %v564 = vsel %vm556, -inf, %v500
        %v565 = vsel %vm557, -inf, %v501
        %v566 = vsel %vm558, -inf, %v502
        %567 = vmax.xlane.f32.xlu0 %v543
        %v568 = vpop.xlane.xlu0 %567
        %569 = vmax.xlane.f32.xlu0 %v544
        %v570 = vpop.xlane.xlu0 %569
        %571 = vmax.xlane.f32.xlu0 %v545
        %v572 = vpop.xlane.xlu0 %571
        %573 = vmax.xlane.f32.xlu0 %v546
        %v574 = vpop.xlane.xlu0 %573
        %575 = vmax.xlane.f32.xlu0 %v547
        %v576 = vpop.xlane.xlu0 %575
        %577 = vmax.xlane.f32.xlu0 %v548
        %v578 = vpop.xlane.xlu0 %577
        %579 = vmax.xlane.f32.xlu0 %v549
        %v580 = vpop.xlane.xlu0 %579
        %581 = vmax.xlane.f32.xlu0 %v550
        %v582 = vpop.xlane.xlu0 %581
        %583 = vmax.xlane.f32.xlu0 %v559
        %v584 = vpop.xlane.xlu0 %583
        %585 = vmax.xlane.f32.xlu0 %v560
        %v586 = vpop.xlane.xlu0 %585
        %587 = vmax.xlane.f32.xlu0 %v561
        %v588 = vpop.xlane.xlu0 %587
        %589 = vmax.xlane.f32.xlu0 %v562
        %v590 = vpop.xlane.xlu0 %589
        %591 = vmax.xlane.f32.xlu0 %v563
        %v592 = vpop.xlane.xlu0 %591
        %593 = vmax.xlane.f32.xlu0 %v564
        %v594 = vpop.xlane.xlu0 %593
        %595 = vmax.xlane.f32.xlu0 %v565
        %v596 = vpop.xlane.xlu0 %595
        %597 = vmax.xlane.f32.xlu0 %v566
        %v598 = vpop.xlane.xlu0 %597
        %vm599 = vcmp.ge.f32.partialorder %v543, %v568
        %vm600 = vcmp.ge.f32.partialorder %v544, %v570
        %vm601 = vcmp.ge.f32.partialorder %v545, %v572
        %vm602 = vcmp.ge.f32.partialorder %v546, %v574
        %vm603 = vcmp.ge.f32.partialorder %v547, %v576
        %vm604 = vcmp.ge.f32.partialorder %v548, %v578
        %vm605 = vcmp.ge.f32.partialorder %v549, %v580
        %vm606 = vcmp.ge.f32.partialorder %v550, %v582
        %v607 = vsel %vm599, -inf, %v543
        %v608 = vsel %vm600, -inf, %v544
        %v609 = vsel %vm601, -inf, %v545
        %v610 = vsel %vm602, -inf, %v546
        %v611 = vsel %vm603, -inf, %v547
        %v612 = vsel %vm604, -inf, %v548
        %v613 = vsel %vm605, -inf, %v549
        %v614 = vsel %vm606, -inf, %v550
        %vm615 = vcmp.ge.f32.partialorder %v559, %v584
        %vm616 = vcmp.ge.f32.partialorder %v560, %v586
        %vm617 = vcmp.ge.f32.partialorder %v561, %v588
        %vm618 = vcmp.ge.f32.partialorder %v562, %v590
        %vm619 = vcmp.ge.f32.partialorder %v563, %v592
        %vm620 = vcmp.ge.f32.partialorder %v564, %v594
        %vm621 = vcmp.ge.f32.partialorder %v565, %v596
        %vm622 = vcmp.ge.f32.partialorder %v566, %v598
        %v623 = vsel %vm615, -inf, %v559
        %v624 = vsel %vm616, -inf, %v560
        %v625 = vsel %vm617, -inf, %v561
        %v626 = vsel %vm618, -inf, %v562
        %v627 = vsel %vm619, -inf, %v563
        %v628 = vsel %vm620, -inf, %v564
        %v629 = vsel %vm621, -inf, %v565
        %v630 = vsel %vm622, -inf, %v566
        %631 = vmax.xlane.f32.xlu0 %v607
        %v632 = vpop.xlane.xlu0 %631
        %633 = vmax.xlane.f32.xlu0 %v608
        %v634 = vpop.xlane.xlu0 %633
        %635 = vmax.xlane.f32.xlu0 %v609
        %v636 = vpop.xlane.xlu0 %635
        %637 = vmax.xlane.f32.xlu0 %v610
        %v638 = vpop.xlane.xlu0 %637
        %639 = vmax.xlane.f32.xlu0 %v611
        %v640 = vpop.xlane.xlu0 %639
        %641 = vmax.xlane.f32.xlu0 %v612
        %v642 = vpop.xlane.xlu0 %641
        %643 = vmax.xlane.f32.xlu0 %v613
        %v644 = vpop.xlane.xlu0 %643
        %645 = vmax.xlane.f32.xlu0 %v614
        %v646 = vpop.xlane.xlu0 %645
        %647 = vmax.xlane.f32.xlu0 %v623
        %v648 = vpop.xlane.xlu0 %647
        %649 = vmax.xlane.f32.xlu0 %v624
        %v650 = vpop.xlane.xlu0 %649
        %651 = vmax.xlane.f32.xlu0 %v625
        %v652 = vpop.xlane.xlu0 %651
        %653 = vmax.xlane.f32.xlu0 %v626
        %v654 = vpop.xlane.xlu0 %653
        %655 = vmax.xlane.f32.xlu0 %v627
        %v656 = vpop.xlane.xlu0 %655
        %657 = vmax.xlane.f32.xlu0 %v628
        %v658 = vpop.xlane.xlu0 %657
        %659 = vmax.xlane.f32.xlu0 %v629
        %v660 = vpop.xlane.xlu0 %659
        %661 = vmax.xlane.f32.xlu0 %v630
        %v662 = vpop.xlane.xlu0 %661
        %vm663 = vcmp.ge.f32.partialorder %v607, %v632
        %vm664 = vcmp.ge.f32.partialorder %v608, %v634
        %vm665 = vcmp.ge.f32.partialorder %v609, %v636
        %vm666 = vcmp.ge.f32.partialorder %v610, %v638
        %vm667 = vcmp.ge.f32.partialorder %v611, %v640
        %vm668 = vcmp.ge.f32.partialorder %v612, %v642
        %vm669 = vcmp.ge.f32.partialorder %v613, %v644
        %vm670 = vcmp.ge.f32.partialorder %v614, %v646
        %v671 = vsel %vm663, -inf, %v607
        %v672 = vsel %vm664, -inf, %v608
        %v673 = vsel %vm665, -inf, %v609
        %v674 = vsel %vm666, -inf, %v610
        %v675 = vsel %vm667, -inf, %v611
        %v676 = vsel %vm668, -inf, %v612
        %v677 = vsel %vm669, -inf, %v613
        %v678 = vsel %vm670, -inf, %v614
        %vm679 = vcmp.ge.f32.partialorder %v623, %v648
        %vm680 = vcmp.ge.f32.partialorder %v624, %v650
        %vm681 = vcmp.ge.f32.partialorder %v625, %v652
        %vm682 = vcmp.ge.f32.partialorder %v626, %v654
        %vm683 = vcmp.ge.f32.partialorder %v627, %v656
        %vm684 = vcmp.ge.f32.partialorder %v628, %v658
        %vm685 = vcmp.ge.f32.partialorder %v629, %v660
        %vm686 = vcmp.ge.f32.partialorder %v630, %v662
        %v687 = vsel %vm679, -inf, %v623
        %v688 = vsel %vm680, -inf, %v624
        %v689 = vsel %vm681, -inf, %v625
        %v690 = vsel %vm682, -inf, %v626
        %v691 = vsel %vm683, -inf, %v627
        %v692 = vsel %vm684, -inf, %v628
        %v693 = vsel %vm685, -inf, %v629
        %v694 = vsel %vm686, -inf, %v630
        %695 = vmax.xlane.f32.xlu0 %v671
        %v696 = vpop.xlane.xlu0 %695
        %697 = vmax.xlane.f32.xlu0 %v672
        %v698 = vpop.xlane.xlu0 %697
        %699 = vmax.xlane.f32.xlu0 %v673
        %v700 = vpop.xlane.xlu0 %699
        %701 = vmax.xlane.f32.xlu0 %v674
        %v702 = vpop.xlane.xlu0 %701
        %703 = vmax.xlane.f32.xlu0 %v675
        %v704 = vpop.xlane.xlu0 %703
        %705 = vmax.xlane.f32.xlu0 %v676
        %v706 = vpop.xlane.xlu0 %705
        %707 = vmax.xlane.f32.xlu0 %v677
        %v708 = vpop.xlane.xlu0 %707
        %709 = vmax.xlane.f32.xlu0 %v678
        %v710 = vpop.xlane.xlu0 %709
        %711 = vmax.xlane.f32.xlu0 %v687
        %v712 = vpop.xlane.xlu0 %711
        %713 = vmax.xlane.f32.xlu0 %v688
        %v714 = vpop.xlane.xlu0 %713
        %715 = vmax.xlane.f32.xlu0 %v689
        %v716 = vpop.xlane.xlu0 %715
        %717 = vmax.xlane.f32.xlu0 %v690
        %v718 = vpop.xlane.xlu0 %717
        %719 = vmax.xlane.f32.xlu0 %v691
        %v720 = vpop.xlane.xlu0 %719
        %721 = vmax.xlane.f32.xlu0 %v692
        %v722 = vpop.xlane.xlu0 %721
        %723 = vmax.xlane.f32.xlu0 %v693
        %v724 = vpop.xlane.xlu0 %723
        %725 = vmax.xlane.f32.xlu0 %v694
        %v726 = vpop.xlane.xlu0 %725
        %vm727 = vcmp.ge.f32.partialorder %v671, %v696
        %vm728 = vcmp.ge.f32.partialorder %v672, %v698
        %vm729 = vcmp.ge.f32.partialorder %v673, %v700
        %vm730 = vcmp.ge.f32.partialorder %v674, %v702
        %vm731 = vcmp.ge.f32.partialorder %v675, %v704
        %vm732 = vcmp.ge.f32.partialorder %v676, %v706
        %vm733 = vcmp.ge.f32.partialorder %v677, %v708
        %vm734 = vcmp.ge.f32.partialorder %v678, %v710
        %v735 = vsel %vm727, -inf, %v671
        %v736 = vsel %vm728, -inf, %v672
        %v737 = vsel %vm729, -inf, %v673
        %v738 = vsel %vm730, -inf, %v674
        %v739 = vsel %vm731, -inf, %v675
        %v740 = vsel %vm732, -inf, %v676
        %v741 = vsel %vm733, -inf, %v677
        %v742 = vsel %vm734, -inf, %v678
        %vm743 = vcmp.ge.f32.partialorder %v687, %v712
        %vm744 = vcmp.ge.f32.partialorder %v688, %v714
        %vm745 = vcmp.ge.f32.partialorder %v689, %v716
        %vm746 = vcmp.ge.f32.partialorder %v690, %v718
        %vm747 = vcmp.ge.f32.partialorder %v691, %v720
        %vm748 = vcmp.ge.f32.partialorder %v692, %v722
        %vm749 = vcmp.ge.f32.partialorder %v693, %v724
        %vm750 = vcmp.ge.f32.partialorder %v694, %v726
        %v751 = vsel %vm743, -inf, %v687
        %v752 = vsel %vm744, -inf, %v688
        %v753 = vsel %vm745, -inf, %v689
        %v754 = vsel %vm746, -inf, %v690
        %v755 = vsel %vm747, -inf, %v691
        %v756 = vsel %vm748, -inf, %v692
        %v757 = vsel %vm749, -inf, %v693
        %v758 = vsel %vm750, -inf, %v694
        %759 = vmax.xlane.f32.xlu0 %v735
        %v760 = vpop.xlane.xlu0 %759
        %761 = vmax.xlane.f32.xlu0 %v736
        %v762 = vpop.xlane.xlu0 %761
        %763 = vmax.xlane.f32.xlu0 %v737
        %v764 = vpop.xlane.xlu0 %763
        %765 = vmax.xlane.f32.xlu0 %v738
        %v766 = vpop.xlane.xlu0 %765
        %767 = vmax.xlane.f32.xlu0 %v739
        %v768 = vpop.xlane.xlu0 %767
        %769 = vmax.xlane.f32.xlu0 %v740
        %v770 = vpop.xlane.xlu0 %769
        %771 = vmax.xlane.f32.xlu0 %v741
        %v772 = vpop.xlane.xlu0 %771
        %773 = vmax.xlane.f32.xlu0 %v742
        %v774 = vpop.xlane.xlu0 %773
        %775 = vmax.xlane.f32.xlu0 %v751
        %v776 = vpop.xlane.xlu0 %775
        %777 = vmax.xlane.f32.xlu0 %v752
        %v778 = vpop.xlane.xlu0 %777
        %779 = vmax.xlane.f32.xlu0 %v753
        %v780 = vpop.xlane.xlu0 %779
        %781 = vmax.xlane.f32.xlu0 %v754
        %v782 = vpop.xlane.xlu0 %781
        %783 = vmax.xlane.f32.xlu0 %v755
        %v784 = vpop.xlane.xlu0 %783
        %785 = vmax.xlane.f32.xlu0 %v756
        %v786 = vpop.xlane.xlu0 %785
        %787 = vmax.xlane.f32.xlu0 %v757
        %v788 = vpop.xlane.xlu0 %787
        %789 = vmax.xlane.f32.xlu0 %v758
        %v790 = vpop.xlane.xlu0 %789
        %vm791 = vcmp.ge.f32.partialorder %v735, %v760
        %vm792 = vcmp.ge.f32.partialorder %v736, %v762
        %vm793 = vcmp.ge.f32.partialorder %v737, %v764
        %vm794 = vcmp.ge.f32.partialorder %v738, %v766
        %vm795 = vcmp.ge.f32.partialorder %v739, %v768
        %vm796 = vcmp.ge.f32.partialorder %v740, %v770
        %vm797 = vcmp.ge.f32.partialorder %v741, %v772
        %vm798 = vcmp.ge.f32.partialorder %v742, %v774
        %v799 = vsel %vm791, -inf, %v735
        %v800 = vsel %vm792, -inf, %v736
        %v801 = vsel %vm793, -inf, %v737
        %v802 = vsel %vm794, -inf, %v738
        %v803 = vsel %vm795, -inf, %v739
        %v804 = vsel %vm796, -inf, %v740
        %v805 = vsel %vm797, -inf, %v741
        %v806 = vsel %vm798, -inf, %v742
        %vm807 = vcmp.ge.f32.partialorder %v751, %v776
        %vm808 = vcmp.ge.f32.partialorder %v752, %v778
        %vm809 = vcmp.ge.f32.partialorder %v753, %v780
        %vm810 = vcmp.ge.f32.partialorder %v754, %v782
        %vm811 = vcmp.ge.f32.partialorder %v755, %v784
        %vm812 = vcmp.ge.f32.partialorder %v756, %v786
        %vm813 = vcmp.ge.f32.partialorder %v757, %v788
        %vm814 = vcmp.ge.f32.partialorder %v758, %v790
        %v815 = vsel %vm807, -inf, %v751
        %v816 = vsel %vm808, -inf, %v752
        %v817 = vsel %vm809, -inf, %v753
        %v818 = vsel %vm810, -inf, %v754
        %v819 = vsel %vm811, -inf, %v755
        %v820 = vsel %vm812, -inf, %v756
        %v821 = vsel %vm813, -inf, %v757
        %v822 = vsel %vm814, -inf, %v758
        %823 = vmax.xlane.f32.xlu0 %v799
        %v824 = vpop.xlane.xlu0 %823
        %825 = vmax.xlane.f32.xlu0 %v800
        %v826 = vpop.xlane.xlu0 %825
        %827 = vmax.xlane.f32.xlu0 %v801
        %v828 = vpop.xlane.xlu0 %827
        %829 = vmax.xlane.f32.xlu0 %v802
        %v830 = vpop.xlane.xlu0 %829
        %831 = vmax.xlane.f32.xlu0 %v803
        %v832 = vpop.xlane.xlu0 %831
        %833 = vmax.xlane.f32.xlu0 %v804
        %v834 = vpop.xlane.xlu0 %833
        %835 = vmax.xlane.f32.xlu0 %v805
        %v836 = vpop.xlane.xlu0 %835
        %837 = vmax.xlane.f32.xlu0 %v806
        %v838 = vpop.xlane.xlu0 %837
        %839 = vmax.xlane.f32.xlu0 %v815
        %v840 = vpop.xlane.xlu0 %839
        %841 = vmax.xlane.f32.xlu0 %v816
        %v842 = vpop.xlane.xlu0 %841
        %843 = vmax.xlane.f32.xlu0 %v817
        %v844 = vpop.xlane.xlu0 %843
        %845 = vmax.xlane.f32.xlu0 %v818
        %v846 = vpop.xlane.xlu0 %845
        %847 = vmax.xlane.f32.xlu0 %v819
        %v848 = vpop.xlane.xlu0 %847
        %849 = vmax.xlane.f32.xlu0 %v820
        %v850 = vpop.xlane.xlu0 %849
        %851 = vmax.xlane.f32.xlu0 %v821
        %v852 = vpop.xlane.xlu0 %851
        %853 = vmax.xlane.f32.xlu0 %v822
        %v854 = vpop.xlane.xlu0 %853
        %vm855 = vcmp.ge.f32.partialorder %v799, %v824
        %vm856 = vcmp.ge.f32.partialorder %v800, %v826
        %vm857 = vcmp.ge.f32.partialorder %v801, %v828
        %vm858 = vcmp.ge.f32.partialorder %v802, %v830
        %vm859 = vcmp.ge.f32.partialorder %v803, %v832
        %vm860 = vcmp.ge.f32.partialorder %v804, %v834
        %vm861 = vcmp.ge.f32.partialorder %v805, %v836
        %vm862 = vcmp.ge.f32.partialorder %v806, %v838
        %v863 = vsel %vm855, -inf, %v799
        %v864 = vsel %vm856, -inf, %v800
        %v865 = vsel %vm857, -inf, %v801
        %v866 = vsel %vm858, -inf, %v802
        %v867 = vsel %vm859, -inf, %v803
        %v868 = vsel %vm860, -inf, %v804
        %v869 = vsel %vm861, -inf, %v805
        %v870 = vsel %vm862, -inf, %v806
        %vm871 = vcmp.ge.f32.partialorder %v815, %v840
        %vm872 = vcmp.ge.f32.partialorder %v816, %v842
        %vm873 = vcmp.ge.f32.partialorder %v817, %v844
        %vm874 = vcmp.ge.f32.partialorder %v818, %v846
        %vm875 = vcmp.ge.f32.partialorder %v819, %v848
        %vm876 = vcmp.ge.f32.partialorder %v820, %v850
        %vm877 = vcmp.ge.f32.partialorder %v821, %v852
        %vm878 = vcmp.ge.f32.partialorder %v822, %v854
        %v879 = vsel %vm871, -inf, %v815
        %v880 = vsel %vm872, -inf, %v816
        %v881 = vsel %vm873, -inf, %v817
        %v882 = vsel %vm874, -inf, %v818
        %v883 = vsel %vm875, -inf, %v819
        %v884 = vsel %vm876, -inf, %v820
        %v885 = vsel %vm877, -inf, %v821
        %v886 = vsel %vm878, -inf, %v822
        %887 = vmax.xlane.f32.xlu0 %v863
        %v888 = vpop.xlane.xlu0 %887
        %889 = vmax.xlane.f32.xlu0 %v864
        %v890 = vpop.xlane.xlu0 %889
        %891 = vmax.xlane.f32.xlu0 %v865
        %v892 = vpop.xlane.xlu0 %891
        %893 = vmax.xlane.f32.xlu0 %v866
        %v894 = vpop.xlane.xlu0 %893
        %895 = vmax.xlane.f32.xlu0 %v867
        %v896 = vpop.xlane.xlu0 %895
        %897 = vmax.xlane.f32.xlu0 %v868
        %v898 = vpop.xlane.xlu0 %897
        %899 = vmax.xlane.f32.xlu0 %v869
        %v900 = vpop.xlane.xlu0 %899
        %901 = vmax.xlane.f32.xlu0 %v870
        %v902 = vpop.xlane.xlu0 %901
        %903 = vmax.xlane.f32.xlu0 %v879
        %v904 = vpop.xlane.xlu0 %903
        %905 = vmax.xlane.f32.xlu0 %v880
        %v906 = vpop.xlane.xlu0 %905
        %907 = vmax.xlane.f32.xlu0 %v881
        %v908 = vpop.xlane.xlu0 %907
        %909 = vmax.xlane.f32.xlu0 %v882
        %v910 = vpop.xlane.xlu0 %909
        %911 = vmax.xlane.f32.xlu0 %v883
        %v912 = vpop.xlane.xlu0 %911
        %913 = vmax.xlane.f32.xlu0 %v884
        %v914 = vpop.xlane.xlu0 %913
        %915 = vmax.xlane.f32.xlu0 %v885
        %v916 = vpop.xlane.xlu0 %915
        %917 = vmax.xlane.f32.xlu0 %v886
        %v918 = vpop.xlane.xlu0 %917
        %vm919 = vcmp.ge.f32.partialorder %v377, %v888
        %vm920 = vcmp.ge.f32.partialorder %v380, %v890
        %vm921 = vcmp.ge.f32.partialorder %v385, %v892
        %vm922 = vcmp.ge.f32.partialorder %v388, %v894
        %vm923 = vcmp.ge.f32.partialorder %v393, %v896
        %vm924 = vcmp.ge.f32.partialorder %v396, %v898
        %vm925 = vcmp.ge.f32.partialorder %v401, %v900
        %vm926 = vcmp.ge.f32.partialorder %v404, %v902
        %v927 = vsub.f32 %v377, %v440
        %v928 = vsub.f32 %v380, %v442
        %v929 = vsub.f32 %v385, %v444
        %v930 = vsub.f32 %v388, %v446
        %v931 = vsub.f32 %v393, %v448
        %v932 = vsub.f32 %v396, %v450
        %v933 = vsub.f32 %v401, %v452
        %v934 = vsub.f32 %v404, %v454
        %v935 = vmul.f32 %v927, 1.442695
        %v936 = vpow.pop %v935
        %v937 = vmul.f32 %v928, 1.442695
        %v938 = vpow.pop %v937
        %v939 = vmul.f32 %v929, 1.442695
        %v940 = vpow.pop %v939
        %v941 = vmul.f32 %v930, 1.442695
        %v942 = vpow.pop %v941
        %v943 = vmul.f32 %v931, 1.442695
        %v944 = vpow.pop %v943
        %v945 = vmul.f32 %v932, 1.442695
        %v946 = vpow.pop %v945
        %v947 = vmul.f32 %v933, 1.442695
        %v948 = vpow.pop %v947
        %v949 = vmul.f32 %v934, 1.442695
        %v950 = vpow.pop %v949
        %v951 = vsel %vm919, %v936, 0.0
        %v952 = vsel %vm920, %v938, 0.0
        %v953 = vsel %vm921, %v940, 0.0
        %v954 = vsel %vm922, %v942, 0.0
        %v955 = vsel %vm923, %v944, 0.0
        %v956 = vsel %vm924, %v946, 0.0
        %v957 = vsel %vm925, %v948, 0.0
        %v958 = vsel %vm926, %v950, 0.0
        %959 = vadd.xlane.f32.xlu0 %v951
        %v960 = vpop.xlane.xlu0 %959
        %961 = vadd.xlane.f32.xlu0 %v952
        %v962 = vpop.xlane.xlu0 %961
        %963 = vadd.xlane.f32.xlu0 %v953
        %v964 = vpop.xlane.xlu0 %963
        %965 = vadd.xlane.f32.xlu0 %v954
        %v966 = vpop.xlane.xlu0 %965
        %967 = vadd.xlane.f32.xlu0 %v955
        %v968 = vpop.xlane.xlu0 %967
        %969 = vadd.xlane.f32.xlu0 %v956
        %v970 = vpop.xlane.xlu0 %969
        %971 = vadd.xlane.f32.xlu0 %v957
        %v972 = vpop.xlane.xlu0 %971
        %973 = vadd.xlane.f32.xlu0 %v958
        %v974 = vpop.xlane.xlu0 %973
        %v975 = vrcp.pop %v960
        %v976 = vrcp.pop %v962
        %v977 = vrcp.pop %v964
        %v978 = vrcp.pop %v966
        %v979 = vrcp.pop %v968
        %v980 = vrcp.pop %v970
        %v981 = vrcp.pop %v972
        %v982 = vrcp.pop %v974
        %v983 = vmul.f32 %v951, %v975
        %v984 = vmul.f32 %v952, %v976
        %v985 = vmul.f32 %v953, %v977
        %v986 = vmul.f32 %v954, %v978
        %v987 = vmul.f32 %v955, %v979
        %v988 = vmul.f32 %v956, %v980
        %v989 = vmul.f32 %v957, %v981
        %v990 = vmul.f32 %v958, %v982
        %991 = vst [vmem:[%s203] sm:$0xff] %v983
        %992 = vst [vmem:[%s203 + $0x8] sm:$0xff] %v984
        %993 = vst [vmem:[%s203 + $0x10] sm:$0xff] %v985
        %994 = vst [vmem:[%s203 + $0x18] sm:$0xff] %v986
        %995 = vst [vmem:[%s203 + $0x20] sm:$0xff] %v987
        %996 = vst [vmem:[%s203 + $0x28] sm:$0xff] %v988
        %997 = vst [vmem:[%s203 + $0x30] sm:$0xff] %v989
        %998 = vst [vmem:[%s203 + $0x38] sm:$0xff] %v990
        %vm999 = vcmp.ge.f32.partialorder %v409, %v904
        %vm1000 = vcmp.ge.f32.partialorder %v412, %v906
        %vm1001 = vcmp.ge.f32.partialorder %v417, %v908
        %vm1002 = vcmp.ge.f32.partialorder %v420, %v910
        %vm1003 = vcmp.ge.f32.partialorder %v425, %v912
        %vm1004 = vcmp.ge.f32.partialorder %v428, %v914
        %vm1005 = vcmp.ge.f32.partialorder %v433, %v916
        %vm1006 = vcmp.ge.f32.partialorder %v436, %v918
        %v1007 = vsub.f32 %v409, %v456
        %v1008 = vsub.f32 %v412, %v458
        %v1009 = vsub.f32 %v417, %v460
        %v1010 = vsub.f32 %v420, %v462
        %v1011 = vsub.f32 %v425, %v464
        %v1012 = vsub.f32 %v428, %v466
        %v1013 = vsub.f32 %v433, %v468
        %v1014 = vsub.f32 %v436, %v470
        %v1015 = vmul.f32 %v1007, 1.442695
        %v1016 = vpow.pop %v1015
        %v1017 = vmul.f32 %v1008, 1.442695
        %v1018 = vpow.pop %v1017
        %v1019 = vmul.f32 %v1009, 1.442695
        %v1020 = vpow.pop %v1019
        %v1021 = vmul.f32 %v1010, 1.442695
        %v1022 = vpow.pop %v1021
        %v1023 = vmul.f32 %v1011, 1.442695
        %v1024 = vpow.pop %v1023
        %v1025 = vmul.f32 %v1012, 1.442695
        %v1026 = vpow.pop %v1025
        %v1027 = vmul.f32 %v1013, 1.442695
        %v1028 = vpow.pop %v1027
        %v1029 = vmul.f32 %v1014, 1.442695
        %v1030 = vpow.pop %v1029
        %v1031 = vsel %vm999, %v1016, 0.0
        %v1032 = vsel %vm1000, %v1018, 0.0
        %v1033 = vsel %vm1001, %v1020, 0.0
        %v1034 = vsel %vm1002, %v1022, 0.0
        %v1035 = vsel %vm1003, %v1024, 0.0
        %v1036 = vsel %vm1004, %v1026, 0.0
        %v1037 = vsel %vm1005, %v1028, 0.0
        %v1038 = vsel %vm1006, %v1030, 0.0
        %1039 = vadd.xlane.f32.xlu0 %v1031
        %v1040 = vpop.xlane.xlu0 %1039
        %1041 = vadd.xlane.f32.xlu0 %v1032
        %v1042 = vpop.xlane.xlu0 %1041
        %1043 = vadd.xlane.f32.xlu0 %v1033
        %v1044 = vpop.xlane.xlu0 %1043
        %1045 = vadd.xlane.f32.xlu0 %v1034
        %v1046 = vpop.xlane.xlu0 %1045
        %1047 = vadd.xlane.f32.xlu0 %v1035
        %v1048 = vpop.xlane.xlu0 %1047
        %1049 = vadd.xlane.f32.xlu0 %v1036
        %v1050 = vpop.xlane.xlu0 %1049
        %1051 = vadd.xlane.f32.xlu0 %v1037
        %v1052 = vpop.xlane.xlu0 %1051
        %1053 = vadd.xlane.f32.xlu0 %v1038
        %v1054 = vpop.xlane.xlu0 %1053
        %v1055 = vrcp.pop %v1040
        %v1056 = vrcp.pop %v1042
        %v1057 = vrcp.pop %v1044
        %v1058 = vrcp.pop %v1046
        %v1059 = vrcp.pop %v1048
        %v1060 = vrcp.pop %v1050
        %v1061 = vrcp.pop %v1052
        %v1062 = vrcp.pop %v1054
        %v1063 = vmul.f32 %v1031, %v1055
        %v1064 = vmul.f32 %v1032, %v1056
        %v1065 = vmul.f32 %v1033, %v1057
        %v1066 = vmul.f32 %v1034, %v1058
        %v1067 = vmul.f32 %v1035, %v1059
        %v1068 = vmul.f32 %v1036, %v1060
        %v1069 = vmul.f32 %v1037, %v1061
        %v1070 = vmul.f32 %v1038, %v1062
        %1071 = vst [vmem:[%s203 + $0x40] sm:$0xff] %v1063
        %1072 = vst [vmem:[%s203 + $0x48] sm:$0xff] %v1064
        %1073 = vst [vmem:[%s203 + $0x50] sm:$0xff] %v1065
        %1074 = vst [vmem:[%s203 + $0x58] sm:$0xff] %v1066
        %1075 = vst [vmem:[%s203 + $0x60] sm:$0xff] %v1067
        %1076 = vst [vmem:[%s203 + $0x68] sm:$0xff] %v1068
        %1077 = vst [vmem:[%s203 + $0x70] sm:$0xff] %v1069
        %1078 = vst [vmem:[%s203 + $0x78] sm:$0xff] %v1070
        %s1079 = sand.u32 %s97, 1
        %s1080 = scalar_lea.sflag [#allocation4], %s1079
        %s1081 = sand.u32 %s97, 1
        %s1082 = smul.addr %s1081, 128
        %s1083 = scalar_lea.vmem [#allocation7], %s1082
        // Predicated region
        $region41: #{tpu_custom_call.1} parent=31 // pred_check
          %p1084 = pneg %p107
        $region42: #{tpu_custom_call.1} parent=31 // pred_check_branch
          %1086 = sbr.rel (%p1084) target = $region44
        $region43: #{tpu_custom_call.1} parent=31 // pred_region
          %s1087 = smul.u32 16, %s21
          %s1089 = ssub.s32 2048, 2048
          %1090 = vsyncadd %s1080, %s1089
          %s1091 = smul.addr %s1087, 128
          %s1092 = scalar_lea.hbm %s3, %s1091
          %s1093 = sshll.u32 %s1083, 4
          %s1094 = int_to_ptr.vmem [resolvable:$true] %s1093
          %1099 = dma.vmem_to_hbm [thread:$0]  %s1094, 2048, %s1092, %s1080, 128, 128, 8
        $region44: #{tpu_custom_call.1} parent=31 // pred_fallthru
          _
      $region32: #{tpu_custom_call.1} parent=5 // pred_fallthru
        _
      %p1100 = scmp.le.s32.totalorder 2, %s16
      // Predicated region
      $region45: #{tpu_custom_call.1} parent=5 // pred_check
        %p1101 = pneg %p1100
      $region46: #{tpu_custom_call.1} parent=5 // pred_check_branch
        %1103 = sbr.rel (%p1101) target = $region48
      $region47: #{tpu_custom_call.1} parent=5 // pred_region
        %s1104 = ssub.s32 %s16, 2
        // Predicated region
        $region49: #{tpu_custom_call.1} parent=47 // pred_check
          %p1105 = pneg %p113
        $region50: #{tpu_custom_call.1} parent=47 // pred_check_branch
          %1107 = sbr.rel (%p1105) target = $region52
        $region51: #{tpu_custom_call.1} parent=47 // pred_region
          %s1108 = sand.u32 %s98, 1
          %s1109 = scalar_lea.sflag [#allocation4], %s1108
          %s1110 = sand.u32 %s98, 1
          %s1111 = smul.addr %s1110, 128
          %s1112 = scalar_lea.vmem [#allocation7], %s1111
          %1113 = dma.done %s1109, 2048
        $region52: #{tpu_custom_call.1} parent=47 // pred_fallthru
          _
      $region48: #{tpu_custom_call.1} parent=5 // pred_fallthru
        _
    $region6: #{tpu_custom_call.1} parent=1 // loop_footer
      %s20 = sadd.s32 1, %s16
    $region7: #{tpu_custom_call.1} parent=1 // loop_footer_branch
      %15 = sbr.rel target = $region3
    $region8: #{tpu_custom_call.1} parent=1 // loop_exit
      _
    %1114 = vsyncpa [#allocation3], 1
    %s1115 = scalar_lea.sflag [#allocation3], 1
    %1116 = vsyncpa %s1115, 1
    %1117 = vsyncpa [#allocation6], 1
    %1118 = vsyncpa [#allocation4], 1
    %s1119 = scalar_lea.sflag [#allocation4], 1
    %1120 = vsyncpa %s1119, 1

// kernel: tpu_custom_call.1
$region0: #{tpu_custom_call.1}
  #allocation0 [shape = 'u32[]', space=smem, size = 0x4, offset = 0x4, fixed_abs, tag = 'smem constant byte address 0x4 - core index']
  #allocation1 [shape = 'u32[144,128]{1,0:T(1,128)}', space=vmem, size = 0x12000, scoped, tag = 'internal scratch']
  %s0 = inlined_call_operand.hbm [shape: bf16[256,128], index: 0, kind: input, shape index: {}]
  %s1 = inlined_call_operand.hbm [shape: bf16[128,128], index: 1, kind: input, shape index: {}]
  %s2 = inlined_call_operand.vmem [shape: f32[1,128], index: 2, kind: input, shape index: {}]
  %s3 = inlined_call_operand.hbm [shape: f32[256,128], index: 3, kind: output, shape index: {}]
  %s4 = sld [smem:[#allocation0]]
  $region53: #{tpu_custom_call.1} parent=0
    _
  %s6 = ssub.s32 1, %s4
  %s7 = scalar_select 0, %s6, %s4
  $region1: #{tpu_custom_call.1} parent=0
    #allocation2 [shape = 'u8[65536]{0}', space=vmem, size = 0x10000, scoped, tag = 'input window, operand 0']
    #allocation3 [shape = 's32[2]{0}', space=sflag, size = 0x8, scoped, tag = 'scoped memory for tpu_custom_call.1']
    #allocation4 [shape = 's32[2]{0}', space=sflag, size = 0x8, scoped, tag = 'scoped memory for tpu_custom_call.1']
    #allocation5 [shape = 'u8[32768]{0}', space=vmem, size = 0x8000, scoped, tag = 'input window, operand 1, single buffered']
    #allocation6 [shape = 's32[1]{0}', space=sflag, size = 0x4, scoped, tag = 'scoped memory for tpu_custom_call.1']
    #allocation7 [shape = 'u8[131072]{0}', space=vmem, size = 0x20000, scoped, tag = 'output window, operand 0']
    %8 = vsyncpa [#allocation3], 0
    %s9 = scalar_lea.sflag [#allocation3], 1
    %10 = vsyncpa %s9, 0
    %11 = vsyncpa [#allocation6], 0
    %12 = vsyncpa [#allocation4], 0
    %s13 = scalar_lea.sflag [#allocation4], 1
    %14 = vsyncpa %s13, 0
    loop: start=0, step=1, limit=4
    $region2: #{tpu_custom_call.1} parent=1 // loop_pre_header
      _
    $region3: #{tpu_custom_call.1} parent=1 // loop_header
      %s16 = sphi 0, %s20
      %p17 = scmp.ge.s32.totalorder %s16, 4
      %s26 = sphi 0, %s28
      %s29 = sphi 0, %s26
      %s30 = sphi 0, %s29
      %s46 = sphi 0, %s30
      %s50 = sphi 0, %s50
      %s52 = sphi 0, %s50
      %s53 = sphi 0, %s52
      %s67 = sphi 0, %s53
      %s71 = sphi 0, %s71
      %s73 = sphi 0, %s71
      %s74 = sphi 0, %s73
      %s88 = sphi 0, %s74
      %s94 = sphi 0, %s96
      %s97 = sphi 0, %s94
      %s98 = sphi 0, %s97
      %s114 = sphi 0, %s98
    $region4: #{tpu_custom_call.1} parent=1 // loop_header_branch
      %19 = sbr.rel (%p17) target = $region8
    $region5: #{tpu_custom_call.1} parent=1 // loop_body
      %s21 = ssub.s32 %s16, 1
      %s22 = ssub.s32 %s16, 2
      %s23 = sadd.s32 %s16, 1
      %s24 = ssub.s32 %s16, %s23
      %p25 = scmp.eq.s32.totalorder %s24, 0
      %s27 = sadd.s32 %s26, 1
      %s28 = scalar_select %p25, %s26, %s27
      %p31 = pneg %p25
      %p32 = scmp.eq.s32.totalorder %s16, 1
      %p33 = por %p31, %p32
      %p34 = scmp.ne.s32.totalorder %s26, %s29
      %p35 = scmp.eq.s32.totalorder %s16, 0
      %p36 = por %p34, %p35
      %p37 = scmp.ne.s32.totalorder %s26, %s29
      %p38 = scmp.eq.s32.totalorder %s21, 1
      %p39 = por %p37, %p38
      %p40 = scmp.ne.s32.totalorder %s29, %s30
      %p41 = scmp.eq.s32.totalorder %s21, 0
      %p42 = por %p40, %p41
      %p43 = scmp.ne.s32.totalorder %s29, %s30
      %p44 = scmp.eq.s32.totalorder %s22, 1
      %p45 = por %p43, %p44
      %p47 = scmp.ne.s32.totalorder %s30, %s46
      %p48 = scmp.eq.s32.totalorder %s22, 0
      %p49 = por %p47, %p48
      %s51 = sadd.s32 %s50, 1
      %p54 = scmp.eq.s32.totalorder %s16, 1
      %p55 = scmp.ne.s32.totalorder %s50, %s52
      %p56 = scmp.eq.s32.totalorder %s16, 0
      %p57 = por %p55, %p56
      %p58 = scmp.ne.s32.totalorder %s50, %s52
      %p59 = scmp.eq.s32.totalorder %s21, 1
      %p60 = por %p58, %p59
      %p61 = scmp.ne.s32.totalorder %s52, %s53
      %p62 = scmp.eq.s32.totalorder %s21, 0
      %p63 = por %p61, %p62
      %p64 = scmp.ne.s32.totalorder %s52, %s53
      %p65 = scmp.eq.s32.totalorder %s22, 1
      %p66 = por %p64, %p65
      %p68 = scmp.ne.s32.totalorder %s53, %s67
      %p69 = scmp.eq.s32.totalorder %s22, 0
      %p70 = por %p68, %p69
      %s72 = sadd.s32 %s71, 1
      %p75 = scmp.eq.s32.totalorder %s16, 1
      %p76 = scmp.ne.s32.totalorder %s71, %s73
      %p77 = scmp.eq.s32.totalorder %s16, 0
      %p78 = por %p76, %p77
      %p79 = scmp.ne.s32.totalorder %s71, %s73
      %p80 = scmp.eq.s32.totalorder %s21, 1
      %p81 = por %p79, %p80
      %p82 = scmp.ne.s32.totalorder %s73, %s74
      %p83 = scmp.eq.s32.totalorder %s21, 0
      %p84 = por %p82, %p83
      %p85 = scmp.ne.s32.totalorder %s73, %s74
      %p86 = scmp.eq.s32.totalorder %s22, 1
      %p87 = por %p85, %p86
      %p89 = scmp.ne.s32.totalorder %s74, %s88
      %p90 = scmp.eq.s32.totalorder %s22, 0
      %p91 = por %p89, %p90
      %s92 = ssub.s32 %s16, %s23
      %p93 = scmp.eq.s32.totalorder %s92, 0
      %s95 = sadd.s32 %s94, 1
      %s96 = scalar_select %p93, %s94, %s95
      %p99 = pneg %p93
      %p100 = scmp.eq.s32.totalorder %s16, 1
      %p101 = por %p99, %p100
      %p102 = scmp.ne.s32.totalorder %s94, %s97
      %p103 = scmp.eq.s32.totalorder %s16, 0
      %p104 = por %p102, %p103
      %p105 = scmp.ne.s32.totalorder %s94, %s97
      %p106 = scmp.eq.s32.totalorder %s21, 1
      %p107 = por %p105, %p106
      %p108 = scmp.ne.s32.totalorder %s97, %s98
      %p109 = scmp.eq.s32.totalorder %s21, 0
      %p110 = por %p108, %p109
      %p111 = scmp.ne.s32.totalorder %s97, %s98
      %p112 = scmp.eq.s32.totalorder %s22, 1
      %p113 = por %p111, %p112
      %p115 = scmp.ne.s32.totalorder %s98, %s114
      %p116 = scmp.eq.s32.totalorder %s22, 0
      %p117 = por %p115, %p116
      %p118 = scmp.le.s32.totalorder 1, %s16
      %p119 = scmp.lt.s32.totalorder %s16, 3
      %p120 = pnand %p118, %p119
      %p121 = pneg %p120
      // Predicated region
      $region9: #{tpu_custom_call.1} parent=5 // pred_check
        _
      $region10: #{tpu_custom_call.1} parent=5 // pred_check_branch
        %123 = sbr.rel (%p120) target = $region12
      $region11: #{tpu_custom_call.1} parent=5 // pred_region
        %s124 = ssub.s32 %s16, 1
        // Predicated region
        $region13: #{tpu_custom_call.1} parent=11 // pred_check
          %p125 = pneg %p63
        $region14: #{tpu_custom_call.1} parent=11 // pred_check_branch
          %127 = sbr.rel (%p125) target = $region16
        $region15: #{tpu_custom_call.1} parent=11 // pred_region
          %s129 = ssub.s32 1024, 1024
          %130 = vsyncadd [#allocation6], %s129
          %s131 = sshll.u32 [#allocation5], 4
          %s132 = int_to_ptr.vmem [resolvable:$true] %s131
          %137 = dma.hbm_to_vmem [thread:$0]  %s1, 1024, %s132, [#allocation6], 64, 64, 4
        $region16: #{tpu_custom_call.1} parent=11 // pred_fallthru
          _
        // Predicated region
        $region17: #{tpu_custom_call.1} parent=11 // pred_check
          %p138 = pneg %p84
        $region18: #{tpu_custom_call.1} parent=11 // pred_check_branch
          %140 = sbr.rel (%p138) target = $region20
        $region19: #{tpu_custom_call.1} parent=11 // pred_region
          _
        $region20: #{tpu_custom_call.1} parent=11 // pred_fallthru
          _
      $region12: #{tpu_custom_call.1} parent=5 // pred_fallthru
        _
      %p141 = scmp.lt.s32.totalorder %s16, 2
      // Predicated region
      $region21: #{tpu_custom_call.1} parent=5 // pred_check
        %p142 = pneg %p141
      $region22: #{tpu_custom_call.1} parent=5 // pred_check_branch
        %144 = sbr.rel (%p142) target = $region24
      $region23: #{tpu_custom_call.1} parent=5 // pred_region
        // Predicated region
        $region25: #{tpu_custom_call.1} parent=23 // pred_check
          %p145 = pneg %p36
        $region26: #{tpu_custom_call.1} parent=23 // pred_check_branch
          %147 = sbr.rel (%p145) target = $region28
        $region27: #{tpu_custom_call.1} parent=23 // pred_region
          %s148 = sand.u32 %s26, 1
          %s149 = scalar_lea.sflag [#allocation3], %s148
          %s150 = sand.u32 %s26, 1
          %s151 = smul.addr %s150, 64
          %s152 = scalar_lea.vmem [#allocation2], %s151
          %s153 = smul.u32 16, %s16
          %s155 = ssub.s32 1024, 1024
          %156 = vsyncadd %s149, %s155
          %s157 = smul.addr %s153, 64
          %s158 = scalar_lea.hbm %s0, %s157
          %s159 = sshll.u32 %s152, 4
          %s160 = int_to_ptr.vmem [resolvable:$true] %s159
          %165 = dma.hbm_to_vmem [thread:$0]  %s158, 1024, %s160, %s149, 64, 64, 4
        $region28: #{tpu_custom_call.1} parent=23 // pred_fallthru
          _
      $region24: #{tpu_custom_call.1} parent=5 // pred_fallthru
        _
      %p166 = scmp.le.s32.totalorder 1, %s16
      %p167 = scmp.lt.s32.totalorder %s16, 3
      %p168 = pnand %p166, %p167
      %p169 = pneg %p168
      // Predicated region
      $region29: #{tpu_custom_call.1} parent=5 // pred_check
        _
      $region30: #{tpu_custom_call.1} parent=5 // pred_check_branch
        %171 = sbr.rel (%p168) target = $region32
      $region31: #{tpu_custom_call.1} parent=5 // pred_region
        %s172 = ssub.s32 %s16, 1
        %s173 = sand.u32 %s29, 1
        %s174 = scalar_lea.sflag [#allocation3], %s173
        %s175 = sand.u32 %s29, 1
        %s176 = smul.addr %s175, 64
        %s177 = scalar_lea.vmem [#allocation2], %s176
        // Predicated region
        $region33: #{tpu_custom_call.1} parent=31 // pred_check
          %p178 = pneg %p42
        $region34: #{tpu_custom_call.1} parent=31 // pred_check_branch
          %180 = sbr.rel (%p178) target = $region36
        $region35: #{tpu_custom_call.1} parent=31 // pred_region
          %181 = dma.done %s174, 1024
        $region36: #{tpu_custom_call.1} parent=31 // pred_fallthru
          _
        // Predicated region
        $region37: #{tpu_custom_call.1} parent=31 // pred_check
          %p182 = pneg %p63
        $region38: #{tpu_custom_call.1} parent=31 // pred_check_branch
          %184 = sbr.rel (%p182) target = $region40
        $region39: #{tpu_custom_call.1} parent=31 // pred_region
          %185 = dma.done [#allocation6], 1024
        $region40: #{tpu_custom_call.1} parent=31 // pred_fallthru
          _
        %s186 = sand.u32 %s29, 1
        %s187 = scalar_lea.sflag [#allocation3], %s186
        %s188 = sand.u32 %s29, 1
        %s189 = smul.addr %s188, 64
        %s190 = scalar_lea.vmem [#allocation2], %s189
        %p191 = pneg %p42
        %p192 = pneg %p39
        %p193 = pneg %p63
        %p194 = pneg %p60
        %p195 = pneg %p84
        %p196 = pneg %p81
        %p197 = pneg %p110
        %p198 = pneg %p107
        %s199 = sand.u32 %s97, 1
        %s200 = scalar_lea.sflag [#allocation4], %s199
        %s201 = sand.u32 %s97, 1
        %s202 = smul.addr %s201, 128
        %s203 = scalar_lea.vmem [#allocation7], %s202
        %s204 = smul.u32 16, %s21
        %s205 = smul.u32 16, %s21
        %v207 = vld [vmem:[%s177] sm:$0xf]
        %v208 = vld [vmem:[%s177 + $0x4] sm:$0xf]
        %v209 = vld [vmem:[%s177 + $0x8] sm:$0xf]
        %v210 = vld [vmem:[%s177 + $0xc] sm:$0xf]
        %v211 = vld [vmem:[%s177 + $0x10] sm:$0xf]
        %v212 = vld [vmem:[%s177 + $0x14] sm:$0xf]
        %v213 = vld [vmem:[%s177 + $0x18] sm:$0xf]
        %v214 = vld [vmem:[%s177 + $0x1c] sm:$0xf]
        %v215 = vld [vmem:[%s177 + $0x20] sm:$0xf]
        %v216 = vld [vmem:[%s177 + $0x24] sm:$0xf]
        %v217 = vld [vmem:[%s177 + $0x28] sm:$0xf]
        %v218 = vld [vmem:[%s177 + $0x2c] sm:$0xf]
        %v219 = vld [vmem:[%s177 + $0x30] sm:$0xf]
        %v220 = vld [vmem:[%s177 + $0x34] sm:$0xf]
        %v221 = vld [vmem:[%s177 + $0x38] sm:$0xf]
        %v222 = vld [vmem:[%s177 + $0x3c] sm:$0xf]
        %v223 = vld [vmem:[#allocation5] sm:$0xf]
        %v224 = vld [vmem:[#allocation5 + $0x4] sm:$0xf]
        %v225 = vld [vmem:[#allocation5 + $0x8] sm:$0xf]
        %v226 = vld [vmem:[#allocation5 + $0xc] sm:$0xf]
        %v227 = vld [vmem:[#allocation5 + $0x10] sm:$0xf]
        %v228 = vld [vmem:[#allocation5 + $0x14] sm:$0xf]
        %v229 = vld [vmem:[#allocation5 + $0x18] sm:$0xf]
        %v230 = vld [vmem:[#allocation5 + $0x1c] sm:$0xf]
        %v231 = vld [vmem:[#allocation5 + $0x20] sm:$0xf]
        %v232 = vld [vmem:[#allocation5 + $0x24] sm:$0xf]
        %v233 = vld [vmem:[#allocation5 + $0x28] sm:$0xf]
        %v234 = vld [vmem:[#allocation5 + $0x2c] sm:$0xf]
        %v235 = vld [vmem:[#allocation5 + $0x30] sm:$0xf]
        %v236 = vld [vmem:[#allocation5 + $0x34] sm:$0xf]
        %v237 = vld [vmem:[#allocation5 + $0x38] sm:$0xf]
        %v238 = vld [vmem:[#allocation5 + $0x3c] sm:$0xf]
        %v239 = vld [vmem:[%s2] sm:$0x1]
        %v241 = vlaneseq
        %v242 = vshrl.u32 %v241, 7
        %v243 = vsub.s32 0, %v242
        %v244 = vrot.slane %v239, %v243
        %v262 = vunpack.c.l.b16 %v207
        %v263 = vunpack.c.l.b16 %v208
        %v264 = vunpack.c.l.b16 %v209
        %v265 = vunpack.c.l.b16 %v210
        %v266 = vunpack.c.l.b16 %v211
        %v267 = vunpack.c.l.b16 %v212
        %v268 = vunpack.c.l.b16 %v213
        %v269 = vunpack.c.l.b16 %v214
        %v270 = vunpack.c.l.b16 %v215
        %v271 = vunpack.c.l.b16 %v216
        %v272 = vunpack.c.l.b16 %v217
        %v273 = vunpack.c.l.b16 %v218
        %v274 = vunpack.c.l.b16 %v219
        %v275 = vunpack.c.l.b16 %v220
        %v276 = vunpack.c.l.b16 %v221
        %v277 = vunpack.c.l.b16 %v222
        %v278 = vpack.c.b16 %v263, %v262
        %v279 = vpack.c.b16 %v265, %v264
        %v280 = vpack.c.b16 %v267, %v266
        %v281 = vpack.c.b16 %v269, %v268
        %v282 = vpack.c.b16 %v271, %v270
        %v283 = vpack.c.b16 %v273, %v272
        %v284 = vpack.c.b16 %v275, %v274
        %v285 = vpack.c.b16 %v277, %v276
        %v310 = vunpack.c.l.b16 %v223
        %v311 = vunpack.c.l.b16 %v224
        %v312 = vunpack.c.l.b16 %v225
        %v313 = vunpack.c.l.b16 %v226
        %v314 = vunpack.c.l.b16 %v227
        %v315 = vunpack.c.l.b16 %v228
        %v316 = vunpack.c.l.b16 %v229
        %v317 = vunpack.c.l.b16 %v230
        %v318 = vunpack.c.l.b16 %v231
        %v319 = vunpack.c.l.b16 %v232
        %v320 = vunpack.c.l.b16 %v233
        %v321 = vunpack.c.l.b16 %v234
        %v322 = vunpack.c.l.b16 %v235
        %v323 = vunpack.c.l.b16 %v236
        %v324 = vunpack.c.l.b16 %v237
        %v325 = vunpack.c.l.b16 %v238
        %v326 = vpack.c.b16 %v311, %v310
        %v327 = vpack.c.b16 %v313, %v312
        %v328 = vpack.c.b16 %v315, %v314
        %v329 = vpack.c.b16 %v317, %v316
        %v330 = vpack.c.b16 %v319, %v318
        %v331 = vpack.c.b16 %v321, %v320
        %v332 = vpack.c.b16 %v323, %v322
        %v333 = vpack.c.b16 %v325, %v324
        %342 = vmatprep.subr.bf16.mxu0 0
        %343 = vmatpush1.bf16.msra.mxu0 %v333
        %344 = vmatprep.subr.bf16.mxu0 0
        %345 = vmatpush1.bf16.msra.mxu0 %v332
        %346 = vmatprep.subr.bf16.mxu0 0
        %347 = vmatpush1.bf16.msra.mxu0 %v331
        %348 = vmatprep.subr.bf16.mxu0 0
        %349 = vmatpush1.bf16.msra.mxu0 %v330
        %350 = vmatprep.subr.bf16.mxu0 0
        %351 = vmatpush1.bf16.msra.mxu0 %v329
        %352 = vmatprep.subr.bf16.mxu0 0
        %353 = vmatpush1.bf16.msra.mxu0 %v328
        %354 = vmatprep.subr.bf16.mxu0 0
        %355 = vmatpush1.bf16.msra.mxu0 %v327
        %356 = vmatprep.subr.bf16.mxu0 0
        %357 = vmatpush1.bf16.msra.mxu0 %v326
        %358 = vmatprep.subr.bf16.mxu0 0
        %359 = vmatpush2.bf16.msra.mxu0 0
        %360 = vmatprep.subr.bf16.mxu0 0
        %361 = vmatpush2.bf16.msra.mxu0 0
        %362 = vmatprep.subr.bf16.mxu0 0
        %363 = vmatpush2.bf16.msra.mxu0 0
        %364 = vmatprep.subr.bf16.mxu0 0
        %365 = vmatpush2.bf16.msra.mxu0 0
        %366 = vmatprep.subr.bf16.mxu0 0
        %367 = vmatpush2.bf16.msra.mxu0 0
        %368 = vmatprep.subr.bf16.mxu0 0
        %369 = vmatpush2.bf16.msra.mxu0 0
        %370 = vmatprep.subr.bf16.mxu0 0
        %371 = vmatpush2.bf16.msra.mxu0 0
        %372 = vmatprep.subr.bf16.mxu0 0
        %373 = vmatpush2.bf16.msra.mxu0 0
        %374 = vmatprep.mubr.bf16.mxu0 0
        %375 = vmatmul.mubr.bf16.gmra.mxu0 %v278
        %v376 = vpop.f32.mrf.mxu0
        %v377 = vadd.f32 %v244, %v376
        %v378 = vpop.f32.mrf.mxu0
        %v379 = vpop.f32.mrf.mxu0
        %v380 = vadd.f32 %v244, %v379
        %v381 = vpop.f32.mrf.mxu0
        %382 = vmatprep.mubr.bf16.mxu0 0
        %383 = vmatmul.mubr.bf16.gmra.mxu0 %v279
        %v384 = vpop.f32.mrf.mxu0
        %v385 = vadd.f32 %v244, %v384
        %v386 = vpop.f32.mrf.mxu0
        %v387 = vpop.f32.mrf.mxu0
        %v388 = vadd.f32 %v244, %v387
        %v389 = vpop.f32.mrf.mxu0
        %390 = vmatprep.mubr.bf16.mxu0 0
        %391 = vmatmul.mubr.bf16.gmra.mxu0 %v280
        %v392 = vpop.f32.mrf.mxu0
        %v393 = vadd.f32 %v244, %v392
        %v394 = vpop.f32.mrf.mxu0
        %v395 = vpop.f32.mrf.mxu0
        %v396 = vadd.f32 %v244, %v395
        %v397 = vpop.f32.mrf.mxu0
        %398 = vmatprep.mubr.bf16.mxu0 0
        %399 = vmatmul.mubr.bf16.gmra.mxu0 %v281
        %v400 = vpop.f32.mrf.mxu0
        %v401 = vadd.f32 %v244, %v400
        %v402 = vpop.f32.mrf.mxu0
        %v403 = vpop.f32.mrf.mxu0
        %v404 = vadd.f32 %v244, %v403
        %v405 = vpop.f32.mrf.mxu0
        %406 = vmatprep.mubr.bf16.mxu0 0
        %407 = vmatmul.mubr.bf16.gmra.mxu0 %v282
        %v408 = vpop.f32.mrf.mxu0
        %v409 = vadd.f32 %v244, %v408
        %v410 = vpop.f32.mrf.mxu0
        %v411 = vpop.f32.mrf.mxu0
        %v412 = vadd.f32 %v244, %v411
        %v413 = vpop.f32.mrf.mxu0
        %414 = vmatprep.mubr.bf16.mxu0 0
        %415 = vmatmul.mubr.bf16.gmra.mxu0 %v283
        %v416 = vpop.f32.mrf.mxu0
        %v417 = vadd.f32 %v244, %v416
        %v418 = vpop.f32.mrf.mxu0
        %v419 = vpop.f32.mrf.mxu0
        %v420 = vadd.f32 %v244, %v419
        %v421 = vpop.f32.mrf.mxu0
        %422 = vmatprep.mubr.bf16.mxu0 0
        %423 = vmatmul.mubr.bf16.gmra.mxu0 %v284
        %v424 = vpop.f32.mrf.mxu0
        %v425 = vadd.f32 %v244, %v424
        %v426 = vpop.f32.mrf.mxu0
        %v427 = vpop.f32.mrf.mxu0
        %v428 = vadd.f32 %v244, %v427
        %v429 = vpop.f32.mrf.mxu0
        %430 = vmatprep.mubr.bf16.mxu0 0
        %431 = vmatmul.mubr.bf16.gmra.mxu0 %v285
        %v432 = vpop.f32.mrf.mxu0
        %v433 = vadd.f32 %v244, %v432
        %v434 = vpop.f32.mrf.mxu0
        %v435 = vpop.f32.mrf.mxu0
        %v436 = vadd.f32 %v244, %v435
        %v437 = vpop.f32.mrf.mxu0
        %438 = vdwg.mxu0
        %439 = vmax.xlane.f32.xlu0 %v377
        %v440 = vpop.xlane.xlu0 %439
        %441 = vmax.xlane.f32.xlu0 %v380
        %v442 = vpop.xlane.xlu0 %441
        %443 = vmax.xlane.f32.xlu0 %v385
        %v444 = vpop.xlane.xlu0 %443
        %445 = vmax.xlane.f32.xlu0 %v388
        %v446 = vpop.xlane.xlu0 %445
        %447 = vmax.xlane.f32.xlu0 %v393
        %v448 = vpop.xlane.xlu0 %447
        %449 = vmax.xlane.f32.xlu0 %v396
        %v450 = vpop.xlane.xlu0 %449
        %451 = vmax.xlane.f32.xlu0 %v401
        %v452 = vpop.xlane.xlu0 %451
        %453 = vmax.xlane.f32.xlu0 %v404
        %v454 = vpop.xlane.xlu0 %453
        %455 = vmax.xlane.f32.xlu0 %v409
        %v456 = vpop.xlane.xlu0 %455
        %457 = vmax.xlane.f32.xlu0 %v412
        %v458 = vpop.xlane.xlu0 %457
        %459 = vmax.xlane.f32.xlu0 %v417
        %v460 = vpop.xlane.xlu0 %459
        %461 = vmax.xlane.f32.xlu0 %v420
        %v462 = vpop.xlane.xlu0 %461
        %463 = vmax.xlane.f32.xlu0 %v425
        %v464 = vpop.xlane.xlu0 %463
        %465 = vmax.xlane.f32.xlu0 %v428
        %v466 = vpop.xlane.xlu0 %465
        %467 = vmax.xlane.f32.xlu0 %v433
        %v468 = vpop.xlane.xlu0 %467
        %469 = vmax.xlane.f32.xlu0 %v436
        %v470 = vpop.xlane.xlu0 %469
        %vm471 = vcmp.ge.f32.partialorder %v377, %v440
        %vm472 = vcmp.ge.f32.partialorder %v380, %v442
        %vm473 = vcmp.ge.f32.partialorder %v385, %v444
        %vm474 = vcmp.ge.f32.partialorder %v388, %v446
        %vm475 = vcmp.ge.f32.partialorder %v393, %v448
        %vm476 = vcmp.ge.f32.partialorder %v396, %v450
        %vm477 = vcmp.ge.f32.partialorder %v401, %v452
        %vm478 = vcmp.ge.f32.partialorder %v404, %v454
        %v479 = vsel %vm471, -inf, %v377
        %v480 = vsel %vm472, -inf, %v380
        %v481 = vsel %vm473, -inf, %v385
        %v482 = vsel %vm474, -inf, %v388
        %v483 = vsel %vm475, -inf, %v393
        %v484 = vsel %vm476, -inf, %v396
        %v485 = vsel %vm477, -inf, %v401
        %v486 = vsel %vm478, -inf, %v404
        %vm487 = vcmp.ge.f32.partialorder %v409, %v456
        %vm488 = vcmp.ge.f32.partialorder %v412, %v458
        %vm489 = vcmp.ge.f32.partialorder %v417, %v460
        %vm490 = vcmp.ge.f32.partialorder %v420, %v462
        %vm491 = vcmp.ge.f32.partialorder %v425, %v464
        %vm492 = vcmp.ge.f32.partialorder %v428, %v466
        %vm493 = vcmp.ge.f32.partialorder %v433, %v468
        %vm494 = vcmp.ge.f32.partialorder %v436, %v470
        %v495 = vsel %vm487, -inf, %v409
        %v496 = vsel %vm488, -inf, %v412
        %v497 = vsel %vm489, -inf, %v417
        %v498 = vsel %vm490, -inf, %v420
        %v499 = vsel %vm491, -inf, %v425
        %v500 = vsel %vm492, -inf, %v428
        %v501 = vsel %vm493, -inf, %v433
        %v502 = vsel %vm494, -inf, %v436
        %503 = vmax.xlane.f32.xlu0 %v479
        %v504 = vpop.xlane.xlu0 %503
        %505 = vmax.xlane.f32.xlu0 %v480
        %v506 = vpop.xlane.xlu0 %505
        %507 = vmax.xlane.f32.xlu0 %v481
        %v508 = vpop.xlane.xlu0 %507
        %509 = vmax.xlane.f32.xlu0 %v482
        %v510 = vpop.xlane.xlu0 %509
        %511 = vmax.xlane.f32.xlu0 %v483
        %v512 = vpop.xlane.xlu0 %511
        %513 = vmax.xlane.f32.xlu0 %v484
        %v514 = vpop.xlane.xlu0 %513
        %515 = vmax.xlane.f32.xlu0 %v485
        %v516 = vpop.xlane.xlu0 %515
        %517 = vmax.xlane.f32.xlu0 %v486
        %v518 = vpop.xlane.xlu0 %517
        %519 = vmax.xlane.f32.xlu0 %v495
        %v520 = vpop.xlane.xlu0 %519
        %521 = vmax.xlane.f32.xlu0 %v496
        %v522 = vpop.xlane.xlu0 %521
        %523 = vmax.xlane.f32.xlu0 %v497
        %v524 = vpop.xlane.xlu0 %523
        %525 = vmax.xlane.f32.xlu0 %v498
        %v526 = vpop.xlane.xlu0 %525
        %527 = vmax.xlane.f32.xlu0 %v499
        %v528 = vpop.xlane.xlu0 %527
        %529 = vmax.xlane.f32.xlu0 %v500
        %v530 = vpop.xlane.xlu0 %529
        %531 = vmax.xlane.f32.xlu0 %v501
        %v532 = vpop.xlane.xlu0 %531
        %533 = vmax.xlane.f32.xlu0 %v502
        %v534 = vpop.xlane.xlu0 %533
        %vm535 = vcmp.ge.f32.partialorder %v479, %v504
        %vm536 = vcmp.ge.f32.partialorder %v480, %v506
        %vm537 = vcmp.ge.f32.partialorder %v481, %v508
        %vm538 = vcmp.ge.f32.partialorder %v482, %v510
        %vm539 = vcmp.ge.f32.partialorder %v483, %v512
        %vm540 = vcmp.ge.f32.partialorder %v484, %v514
        %vm541 = vcmp.ge.f32.partialorder %v485, %v516
        %vm542 = vcmp.ge.f32.partialorder %v486, %v518
        %v543 = vsel %vm535, -inf, %v479
        %v544 = vsel %vm536, -inf, %v480
        %v545 = vsel %vm537, -inf, %v481
        %v546 = vsel %vm538, -inf, %v482
        %v547 = vsel %vm539, -inf, %v483
        %v548 = vsel %vm540, -inf, %v484
        %v549 = vsel %vm541, -inf, %v485
        %v550 = vsel %vm542, -inf, %v486
        %vm551 = vcmp.ge.f32.partialorder %v495, %v520
        %vm552 = vcmp.ge.f32.partialorder %v496, %v522
        %vm553 = vcmp.ge.f32.partialorder %v497, %v524
        %vm554 = vcmp.ge.f32.partialorder %v498, %v526
        %vm555 = vcmp.ge.f32.partialorder %v499, %v528
        %vm556 = vcmp.ge.f32.partialorder %v500, %v530
        %vm557 = vcmp.ge.f32.partialorder %v501, %v532
        %vm558 = vcmp.ge.f32.partialorder %v502, %v534
        %v559 = vsel %vm551, -inf, %v495
        %v560 = vsel %vm552, -inf, %v496
        %v561 = vsel %vm553, -inf, %v497
        %v562 = vsel %vm554, -inf, %v498
        %v563 = vsel %vm555, -inf, %v499
        %v564 = vsel %vm556, -inf, %v500
        %v565 = vsel %vm557, -inf, %v501
        %v566 = vsel %vm558, -inf, %v502
        %567 = vmax.xlane.f32.xlu0 %v543
        %v568 = vpop.xlane.xlu0 %567
        %569 = vmax.xlane.f32.xlu0 %v544
        %v570 = vpop.xlane.xlu0 %569
        %571 = vmax.xlane.f32.xlu0 %v545
        %v572 = vpop.xlane.xlu0 %571
        %573 = vmax.xlane.f32.xlu0 %v546
        %v574 = vpop.xlane.xlu0 %573
        %575 = vmax.xlane.f32.xlu0 %v547
        %v576 = vpop.xlane.xlu0 %575
        %577 = vmax.xlane.f32.xlu0 %v548
        %v578 = vpop.xlane.xlu0 %577
        %579 = vmax.xlane.f32.xlu0 %v549
        %v580 = vpop.xlane.xlu0 %579
        %581 = vmax.xlane.f32.xlu0 %v550
        %v582 = vpop.xlane.xlu0 %581
        %583 = vmax.xlane.f32.xlu0 %v559
        %v584 = vpop.xlane.xlu0 %583
        %585 = vmax.xlane.f32.xlu0 %v560
        %v586 = vpop.xlane.xlu0 %585
        %587 = vmax.xlane.f32.xlu0 %v561
        %v588 = vpop.xlane.xlu0 %587
        %589 = vmax.xlane.f32.xlu0 %v562
        %v590 = vpop.xlane.xlu0 %589
        %591 = vmax.xlane.f32.xlu0 %v563
        %v592 = vpop.xlane.xlu0 %591
        %593 = vmax.xlane.f32.xlu0 %v564
        %v594 = vpop.xlane.xlu0 %593
        %595 = vmax.xlane.f32.xlu0 %v565
        %v596 = vpop.xlane.xlu0 %595
        %597 = vmax.xlane.f32.xlu0 %v566
        %v598 = vpop.xlane.xlu0 %597
        %vm599 = vcmp.ge.f32.partialorder %v543, %v568
        %vm600 = vcmp.ge.f32.partialorder %v544, %v570
        %vm601 = vcmp.ge.f32.partialorder %v545, %v572
        %vm602 = vcmp.ge.f32.partialorder %v546, %v574
        %vm603 = vcmp.ge.f32.partialorder %v547, %v576
        %vm604 = vcmp.ge.f32.partialorder %v548, %v578
        %vm605 = vcmp.ge.f32.partialorder %v549, %v580
        %vm606 = vcmp.ge.f32.partialorder %v550, %v582
        %v607 = vsel %vm599, -inf, %v543
        %v608 = vsel %vm600, -inf, %v544
        %v609 = vsel %vm601, -inf, %v545
        %v610 = vsel %vm602, -inf, %v546
        %v611 = vsel %vm603, -inf, %v547
        %v612 = vsel %vm604, -inf, %v548
        %v613 = vsel %vm605, -inf, %v549
        %v614 = vsel %vm606, -inf, %v550
        %vm615 = vcmp.ge.f32.partialorder %v559, %v584
        %vm616 = vcmp.ge.f32.partialorder %v560, %v586
        %vm617 = vcmp.ge.f32.partialorder %v561, %v588
        %vm618 = vcmp.ge.f32.partialorder %v562, %v590
        %vm619 = vcmp.ge.f32.partialorder %v563, %v592
        %vm620 = vcmp.ge.f32.partialorder %v564, %v594
        %vm621 = vcmp.ge.f32.partialorder %v565, %v596
        %vm622 = vcmp.ge.f32.partialorder %v566, %v598
        %v623 = vsel %vm615, -inf, %v559
        %v624 = vsel %vm616, -inf, %v560
        %v625 = vsel %vm617, -inf, %v561
        %v626 = vsel %vm618, -inf, %v562
        %v627 = vsel %vm619, -inf, %v563
        %v628 = vsel %vm620, -inf, %v564
        %v629 = vsel %vm621, -inf, %v565
        %v630 = vsel %vm622, -inf, %v566
        %631 = vmax.xlane.f32.xlu0 %v607
        %v632 = vpop.xlane.xlu0 %631
        %633 = vmax.xlane.f32.xlu0 %v608
        %v634 = vpop.xlane.xlu0 %633
        %635 = vmax.xlane.f32.xlu0 %v609
        %v636 = vpop.xlane.xlu0 %635
        %637 = vmax.xlane.f32.xlu0 %v610
        %v638 = vpop.xlane.xlu0 %637
        %639 = vmax.xlane.f32.xlu0 %v611
        %v640 = vpop.xlane.xlu0 %639
        %641 = vmax.xlane.f32.xlu0 %v612
        %v642 = vpop.xlane.xlu0 %641
        %643 = vmax.xlane.f32.xlu0 %v613
        %v644 = vpop.xlane.xlu0 %643
        %645 = vmax.xlane.f32.xlu0 %v614
        %v646 = vpop.xlane.xlu0 %645
        %647 = vmax.xlane.f32.xlu0 %v623
        %v648 = vpop.xlane.xlu0 %647
        %649 = vmax.xlane.f32.xlu0 %v624
        %v650 = vpop.xlane.xlu0 %649
        %651 = vmax.xlane.f32.xlu0 %v625
        %v652 = vpop.xlane.xlu0 %651
        %653 = vmax.xlane.f32.xlu0 %v626
        %v654 = vpop.xlane.xlu0 %653
        %655 = vmax.xlane.f32.xlu0 %v627
        %v656 = vpop.xlane.xlu0 %655
        %657 = vmax.xlane.f32.xlu0 %v628
        %v658 = vpop.xlane.xlu0 %657
        %659 = vmax.xlane.f32.xlu0 %v629
        %v660 = vpop.xlane.xlu0 %659
        %661 = vmax.xlane.f32.xlu0 %v630
        %v662 = vpop.xlane.xlu0 %661
        %vm663 = vcmp.ge.f32.partialorder %v607, %v632
        %vm664 = vcmp.ge.f32.partialorder %v608, %v634
        %vm665 = vcmp.ge.f32.partialorder %v609, %v636
        %vm666 = vcmp.ge.f32.partialorder %v610, %v638
        %vm667 = vcmp.ge.f32.partialorder %v611, %v640
        %vm668 = vcmp.ge.f32.partialorder %v612, %v642
        %vm669 = vcmp.ge.f32.partialorder %v613, %v644
        %vm670 = vcmp.ge.f32.partialorder %v614, %v646
        %v671 = vsel %vm663, -inf, %v607
        %v672 = vsel %vm664, -inf, %v608
        %v673 = vsel %vm665, -inf, %v609
        %v674 = vsel %vm666, -inf, %v610
        %v675 = vsel %vm667, -inf, %v611
        %v676 = vsel %vm668, -inf, %v612
        %v677 = vsel %vm669, -inf, %v613
        %v678 = vsel %vm670, -inf, %v614
        %vm679 = vcmp.ge.f32.partialorder %v623, %v648
        %vm680 = vcmp.ge.f32.partialorder %v624, %v650
        %vm681 = vcmp.ge.f32.partialorder %v625, %v652
        %vm682 = vcmp.ge.f32.partialorder %v626, %v654
        %vm683 = vcmp.ge.f32.partialorder %v627, %v656
        %vm684 = vcmp.ge.f32.partialorder %v628, %v658
        %vm685 = vcmp.ge.f32.partialorder %v629, %v660
        %vm686 = vcmp.ge.f32.partialorder %v630, %v662
        %v687 = vsel %vm679, -inf, %v623
        %v688 = vsel %vm680, -inf, %v624
        %v689 = vsel %vm681, -inf, %v625
        %v690 = vsel %vm682, -inf, %v626
        %v691 = vsel %vm683, -inf, %v627
        %v692 = vsel %vm684, -inf, %v628
        %v693 = vsel %vm685, -inf, %v629
        %v694 = vsel %vm686, -inf, %v630
        %695 = vmax.xlane.f32.xlu0 %v671
        %v696 = vpop.xlane.xlu0 %695
        %697 = vmax.xlane.f32.xlu0 %v672
        %v698 = vpop.xlane.xlu0 %697
        %699 = vmax.xlane.f32.xlu0 %v673
        %v700 = vpop.xlane.xlu0 %699
        %701 = vmax.xlane.f32.xlu0 %v674
        %v702 = vpop.xlane.xlu0 %701
        %703 = vmax.xlane.f32.xlu0 %v675
        %v704 = vpop.xlane.xlu0 %703
        %705 = vmax.xlane.f32.xlu0 %v676
        %v706 = vpop.xlane.xlu0 %705
        %707 = vmax.xlane.f32.xlu0 %v677
        %v708 = vpop.xlane.xlu0 %707
        %709 = vmax.xlane.f32.xlu0 %v678
        %v710 = vpop.xlane.xlu0 %709
        %711 = vmax.xlane.f32.xlu0 %v687
        %v712 = vpop.xlane.xlu0 %711
        %713 = vmax.xlane.f32.xlu0 %v688
        %v714 = vpop.xlane.xlu0 %713
        %715 = vmax.xlane.f32.xlu0 %v689
        %v716 = vpop.xlane.xlu0 %715
        %717 = vmax.xlane.f32.xlu0 %v690
        %v718 = vpop.xlane.xlu0 %717
        %719 = vmax.xlane.f32.xlu0 %v691
        %v720 = vpop.xlane.xlu0 %719
        %721 = vmax.xlane.f32.xlu0 %v692
        %v722 = vpop.xlane.xlu0 %721
        %723 = vmax.xlane.f32.xlu0 %v693
        %v724 = vpop.xlane.xlu0 %723
        %725 = vmax.xlane.f32.xlu0 %v694
        %v726 = vpop.xlane.xlu0 %725
        %vm727 = vcmp.ge.f32.partialorder %v671, %v696
        %vm728 = vcmp.ge.f32.partialorder %v672, %v698
        %vm729 = vcmp.ge.f32.partialorder %v673, %v700
        %vm730 = vcmp.ge.f32.partialorder %v674, %v702
        %vm731 = vcmp.ge.f32.partialorder %v675, %v704
        %vm732 = vcmp.ge.f32.partialorder %v676, %v706
        %vm733 = vcmp.ge.f32.partialorder %v677, %v708
        %vm734 = vcmp.ge.f32.partialorder %v678, %v710
        %v735 = vsel %vm727, -inf, %v671
        %v736 = vsel %vm728, -inf, %v672
        %v737 = vsel %vm729, -inf, %v673
        %v738 = vsel %vm730, -inf, %v674
        %v739 = vsel %vm731, -inf, %v675
        %v740 = vsel %vm732, -inf, %v676
        %v741 = vsel %vm733, -inf, %v677
        %v742 = vsel %vm734, -inf, %v678
        %vm743 = vcmp.ge.f32.partialorder %v687, %v712
        %vm744 = vcmp.ge.f32.partialorder %v688, %v714
        %vm745 = vcmp.ge.f32.partialorder %v689, %v716
        %vm746 = vcmp.ge.f32.partialorder %v690, %v718
        %vm747 = vcmp.ge.f32.partialorder %v691, %v720
        %vm748 = vcmp.ge.f32.partialorder %v692, %v722
        %vm749 = vcmp.ge.f32.partialorder %v693, %v724
        %vm750 = vcmp.ge.f32.partialorder %v694, %v726
        %v751 = vsel %vm743, -inf, %v687
        %v752 = vsel %vm744, -inf, %v688
        %v753 = vsel %vm745, -inf, %v689
        %v754 = vsel %vm746, -inf, %v690
        %v755 = vsel %vm747, -inf, %v691
        %v756 = vsel %vm748, -inf, %v692
        %v757 = vsel %vm749, -inf, %v693
        %v758 = vsel %vm750, -inf, %v694
        %759 = vmax.xlane.f32.xlu0 %v735
        %v760 = vpop.xlane.xlu0 %759
        %761 = vmax.xlane.f32.xlu0 %v736
        %v762 = vpop.xlane.xlu0 %761
        %763 = vmax.xlane.f32.xlu0 %v737
        %v764 = vpop.xlane.xlu0 %763
        %765 = vmax.xlane.f32.xlu0 %v738
        %v766 = vpop.xlane.xlu0 %765
        %767 = vmax.xlane.f32.xlu0 %v739
        %v768 = vpop.xlane.xlu0 %767
        %769 = vmax.xlane.f32.xlu0 %v740
        %v770 = vpop.xlane.xlu0 %769
        %771 = vmax.xlane.f32.xlu0 %v741
        %v772 = vpop.xlane.xlu0 %771
        %773 = vmax.xlane.f32.xlu0 %v742
        %v774 = vpop.xlane.xlu0 %773
        %775 = vmax.xlane.f32.xlu0 %v751
        %v776 = vpop.xlane.xlu0 %775
        %777 = vmax.xlane.f32.xlu0 %v752
        %v778 = vpop.xlane.xlu0 %777
        %779 = vmax.xlane.f32.xlu0 %v753
        %v780 = vpop.xlane.xlu0 %779
        %781 = vmax.xlane.f32.xlu0 %v754
        %v782 = vpop.xlane.xlu0 %781
        %783 = vmax.xlane.f32.xlu0 %v755
        %v784 = vpop.xlane.xlu0 %783
        %785 = vmax.xlane.f32.xlu0 %v756
        %v786 = vpop.xlane.xlu0 %785
        %787 = vmax.xlane.f32.xlu0 %v757
        %v788 = vpop.xlane.xlu0 %787
        %789 = vmax.xlane.f32.xlu0 %v758
        %v790 = vpop.xlane.xlu0 %789
        %vm791 = vcmp.ge.f32.partialorder %v735, %v760
        %vm792 = vcmp.ge.f32.partialorder %v736, %v762
        %vm793 = vcmp.ge.f32.partialorder %v737, %v764
        %vm794 = vcmp.ge.f32.partialorder %v738, %v766
        %vm795 = vcmp.ge.f32.partialorder %v739, %v768
        %vm796 = vcmp.ge.f32.partialorder %v740, %v770
        %vm797 = vcmp.ge.f32.partialorder %v741, %v772
        %vm798 = vcmp.ge.f32.partialorder %v742, %v774
        %v799 = vsel %vm791, -inf, %v735
        %v800 = vsel %vm792, -inf, %v736
        %v801 = vsel %vm793, -inf, %v737
        %v802 = vsel %vm794, -inf, %v738
        %v803 = vsel %vm795, -inf, %v739
        %v804 = vsel %vm796, -inf, %v740
        %v805 = vsel %vm797, -inf, %v741
        %v806 = vsel %vm798, -inf, %v742
        %vm807 = vcmp.ge.f32.partialorder %v751, %v776
        %vm808 = vcmp.ge.f32.partialorder %v752, %v778
        %vm809 = vcmp.ge.f32.partialorder %v753, %v780
        %vm810 = vcmp.ge.f32.partialorder %v754, %v782
        %vm811 = vcmp.ge.f32.partialorder %v755, %v784
        %vm812 = vcmp.ge.f32.partialorder %v756, %v786
        %vm813 = vcmp.ge.f32.partialorder %v757, %v788
        %vm814 = vcmp.ge.f32.partialorder %v758, %v790
        %v815 = vsel %vm807, -inf, %v751
        %v816 = vsel %vm808, -inf, %v752
        %v817 = vsel %vm809, -inf, %v753
        %v818 = vsel %vm810, -inf, %v754
        %v819 = vsel %vm811, -inf, %v755
        %v820 = vsel %vm812, -inf, %v756
        %v821 = vsel %vm813, -inf, %v757
        %v822 = vsel %vm814, -inf, %v758
        %823 = vmax.xlane.f32.xlu0 %v799
        %v824 = vpop.xlane.xlu0 %823
        %825 = vmax.xlane.f32.xlu0 %v800
        %v826 = vpop.xlane.xlu0 %825
        %827 = vmax.xlane.f32.xlu0 %v801
        %v828 = vpop.xlane.xlu0 %827
        %829 = vmax.xlane.f32.xlu0 %v802
        %v830 = vpop.xlane.xlu0 %829
        %831 = vmax.xlane.f32.xlu0 %v803
        %v832 = vpop.xlane.xlu0 %831
        %833 = vmax.xlane.f32.xlu0 %v804
        %v834 = vpop.xlane.xlu0 %833
        %835 = vmax.xlane.f32.xlu0 %v805
        %v836 = vpop.xlane.xlu0 %835
        %837 = vmax.xlane.f32.xlu0 %v806
        %v838 = vpop.xlane.xlu0 %837
        %839 = vmax.xlane.f32.xlu0 %v815
        %v840 = vpop.xlane.xlu0 %839
        %841 = vmax.xlane.f32.xlu0 %v816
        %v842 = vpop.xlane.xlu0 %841
        %843 = vmax.xlane.f32.xlu0 %v817
        %v844 = vpop.xlane.xlu0 %843
        %845 = vmax.xlane.f32.xlu0 %v818
        %v846 = vpop.xlane.xlu0 %845
        %847 = vmax.xlane.f32.xlu0 %v819
        %v848 = vpop.xlane.xlu0 %847
        %849 = vmax.xlane.f32.xlu0 %v820
        %v850 = vpop.xlane.xlu0 %849
        %851 = vmax.xlane.f32.xlu0 %v821
        %v852 = vpop.xlane.xlu0 %851
        %853 = vmax.xlane.f32.xlu0 %v822
        %v854 = vpop.xlane.xlu0 %853
        %vm855 = vcmp.ge.f32.partialorder %v799, %v824
        %vm856 = vcmp.ge.f32.partialorder %v800, %v826
        %vm857 = vcmp.ge.f32.partialorder %v801, %v828
        %vm858 = vcmp.ge.f32.partialorder %v802, %v830
        %vm859 = vcmp.ge.f32.partialorder %v803, %v832
        %vm860 = vcmp.ge.f32.partialorder %v804, %v834
        %vm861 = vcmp.ge.f32.partialorder %v805, %v836
        %vm862 = vcmp.ge.f32.partialorder %v806, %v838
        %v863 = vsel %vm855, -inf, %v799
        %v864 = vsel %vm856, -inf, %v800
        %v865 = vsel %vm857, -inf, %v801
        %v866 = vsel %vm858, -inf, %v802
        %v867 = vsel %vm859, -inf, %v803
        %v868 = vsel %vm860, -inf, %v804
        %v869 = vsel %vm861, -inf, %v805
        %v870 = vsel %vm862, -inf, %v806
        %vm871 = vcmp.ge.f32.partialorder %v815, %v840
        %vm872 = vcmp.ge.f32.partialorder %v816, %v842
        %vm873 = vcmp.ge.f32.partialorder %v817, %v844
        %vm874 = vcmp.ge.f32.partialorder %v818, %v846
        %vm875 = vcmp.ge.f32.partialorder %v819, %v848
        %vm876 = vcmp.ge.f32.partialorder %v820, %v850
        %vm877 = vcmp.ge.f32.partialorder %v821, %v852
        %vm878 = vcmp.ge.f32.partialorder %v822, %v854
        %v879 = vsel %vm871, -inf, %v815
        %v880 = vsel %vm872, -inf, %v816
        %v881 = vsel %vm873, -inf, %v817
        %v882 = vsel %vm874, -inf, %v818
        %v883 = vsel %vm875, -inf, %v819
        %v884 = vsel %vm876, -inf, %v820
        %v885 = vsel %vm877, -inf, %v821
        %v886 = vsel %vm878, -inf, %v822
        %887 = vmax.xlane.f32.xlu0 %v863
        %v888 = vpop.xlane.xlu0 %887
        %889 = vmax.xlane.f32.xlu0 %v864
        %v890 = vpop.xlane.xlu0 %889
        %891 = vmax.xlane.f32.xlu0 %v865
        %v892 = vpop.xlane.xlu0 %891
        %893 = vmax.xlane.f32.xlu0 %v866
        %v894 = vpop.xlane.xlu0 %893
        %895 = vmax.xlane.f32.xlu0 %v867
        %v896 = vpop.xlane.xlu0 %895
        %897 = vmax.xlane.f32.xlu0 %v868
        %v898 = vpop.xlane.xlu0 %897
        %899 = vmax.xlane.f32.xlu0 %v869
        %v900 = vpop.xlane.xlu0 %899
        %901 = vmax.xlane.f32.xlu0 %v870
        %v902 = vpop.xlane.xlu0 %901
        %903 = vmax.xlane.f32.xlu0 %v879
        %v904 = vpop.xlane.xlu0 %903
        %905 = vmax.xlane.f32.xlu0 %v880
        %v906 = vpop.xlane.xlu0 %905
        %907 = vmax.xlane.f32.xlu0 %v881
        %v908 = vpop.xlane.xlu0 %907
        %909 = vmax.xlane.f32.xlu0 %v882
        %v910 = vpop.xlane.xlu0 %909
        %911 = vmax.xlane.f32.xlu0 %v883
        %v912 = vpop.xlane.xlu0 %911
        %913 = vmax.xlane.f32.xlu0 %v884
        %v914 = vpop.xlane.xlu0 %913
        %915 = vmax.xlane.f32.xlu0 %v885
        %v916 = vpop.xlane.xlu0 %915
        %917 = vmax.xlane.f32.xlu0 %v886
        %v918 = vpop.xlane.xlu0 %917
        %vm919 = vcmp.ge.f32.partialorder %v377, %v888
        %vm920 = vcmp.ge.f32.partialorder %v380, %v890
        %vm921 = vcmp.ge.f32.partialorder %v385, %v892
        %vm922 = vcmp.ge.f32.partialorder %v388, %v894
        %vm923 = vcmp.ge.f32.partialorder %v393, %v896
        %vm924 = vcmp.ge.f32.partialorder %v396, %v898
        %vm925 = vcmp.ge.f32.partialorder %v401, %v900
        %vm926 = vcmp.ge.f32.partialorder %v404, %v902
        %v927 = vsub.f32 %v377, %v440
        %v928 = vsub.f32 %v380, %v442
        %v929 = vsub.f32 %v385, %v444
        %v930 = vsub.f32 %v388, %v446
        %v931 = vsub.f32 %v393, %v448
        %v932 = vsub.f32 %v396, %v450
        %v933 = vsub.f32 %v401, %v452
        %v934 = vsub.f32 %v404, %v454
        %v935 = vmul.f32 %v927, 1.442695
        %v936 = vpow.pop %v935
        %v937 = vmul.f32 %v928, 1.442695
        %v938 = vpow.pop %v937
        %v939 = vmul.f32 %v929, 1.442695
        %v940 = vpow.pop %v939
        %v941 = vmul.f32 %v930, 1.442695
        %v942 = vpow.pop %v941
        %v943 = vmul.f32 %v931, 1.442695
        %v944 = vpow.pop %v943
        %v945 = vmul.f32 %v932, 1.442695
        %v946 = vpow.pop %v945
        %v947 = vmul.f32 %v933, 1.442695
        %v948 = vpow.pop %v947
        %v949 = vmul.f32 %v934, 1.442695
        %v950 = vpow.pop %v949
        %v951 = vsel %vm919, %v936, 0.0
        %v952 = vsel %vm920, %v938, 0.0
        %v953 = vsel %vm921, %v940, 0.0
        %v954 = vsel %vm922, %v942, 0.0
        %v955 = vsel %vm923, %v944, 0.0
        %v956 = vsel %vm924, %v946, 0.0
        %v957 = vsel %vm925, %v948, 0.0
        %v958 = vsel %vm926, %v950, 0.0
        %959 = vadd.xlane.f32.xlu0 %v951
        %v960 = vpop.xlane.xlu0 %959
        %961 = vadd.xlane.f32.xlu0 %v952
        %v962 = vpop.xlane.xlu0 %961
        %963 = vadd.xlane.f32.xlu0 %v953
        %v964 = vpop.xlane.xlu0 %963
        %965 = vadd.xlane.f32.xlu0 %v954
        %v966 = vpop.xlane.xlu0 %965
        %967 = vadd.xlane.f32.xlu0 %v955
        %v968 = vpop.xlane.xlu0 %967
        %969 = vadd.xlane.f32.xlu0 %v956
        %v970 = vpop.xlane.xlu0 %969
        %971 = vadd.xlane.f32.xlu0 %v957
        %v972 = vpop.xlane.xlu0 %971
        %973 = vadd.xlane.f32.xlu0 %v958
        %v974 = vpop.xlane.xlu0 %973
        %v975 = vrcp.pop %v960
        %v976 = vrcp.pop %v962
        %v977 = vrcp.pop %v964
        %v978 = vrcp.pop %v966
        %v979 = vrcp.pop %v968
        %v980 = vrcp.pop %v970
        %v981 = vrcp.pop %v972
        %v982 = vrcp.pop %v974
        %v983 = vmul.f32 %v951, %v975
        %v984 = vmul.f32 %v952, %v976
        %v985 = vmul.f32 %v953, %v977
        %v986 = vmul.f32 %v954, %v978
        %v987 = vmul.f32 %v955, %v979
        %v988 = vmul.f32 %v956, %v980
        %v989 = vmul.f32 %v957, %v981
        %v990 = vmul.f32 %v958, %v982
        %991 = vst [vmem:[%s203] sm:$0xff] %v983
        %992 = vst [vmem:[%s203 + $0x8] sm:$0xff] %v984
        %993 = vst [vmem:[%s203 + $0x10] sm:$0xff] %v985
        %994 = vst [vmem:[%s203 + $0x18] sm:$0xff] %v986
        %995 = vst [vmem:[%s203 + $0x20] sm:$0xff] %v987
        %996 = vst [vmem:[%s203 + $0x28] sm:$0xff] %v988
        %997 = vst [vmem:[%s203 + $0x30] sm:$0xff] %v989
        %998 = vst [vmem:[%s203 + $0x38] sm:$0xff] %v990
        %vm999 = vcmp.ge.f32.partialorder %v409, %v904
        %vm1000 = vcmp.ge.f32.partialorder %v412, %v906
        %vm1001 = vcmp.ge.f32.partialorder %v417, %v908
        %vm1002 = vcmp.ge.f32.partialorder %v420, %v910
        %vm1003 = vcmp.ge.f32.partialorder %v425, %v912
        %vm1004 = vcmp.ge.f32.partialorder %v428, %v914
        %vm1005 = vcmp.ge.f32.partialorder %v433, %v916
        %vm1006 = vcmp.ge.f32.partialorder %v436, %v918
        %v1007 = vsub.f32 %v409, %v456
        %v1008 = vsub.f32 %v412, %v458
        %v1009 = vsub.f32 %v417, %v460
        %v1010 = vsub.f32 %v420, %v462
        %v1011 = vsub.f32 %v425, %v464
        %v1012 = vsub.f32 %v428, %v466
        %v1013 = vsub.f32 %v433, %v468
        %v1014 = vsub.f32 %v436, %v470
        %v1015 = vmul.f32 %v1007, 1.442695
        %v1016 = vpow.pop %v1015
        %v1017 = vmul.f32 %v1008, 1.442695
        %v1018 = vpow.pop %v1017
        %v1019 = vmul.f32 %v1009, 1.442695
        %v1020 = vpow.pop %v1019
        %v1021 = vmul.f32 %v1010, 1.442695
        %v1022 = vpow.pop %v1021
        %v1023 = vmul.f32 %v1011, 1.442695
        %v1024 = vpow.pop %v1023
        %v1025 = vmul.f32 %v1012, 1.442695
        %v1026 = vpow.pop %v1025
        %v1027 = vmul.f32 %v1013, 1.442695
        %v1028 = vpow.pop %v1027
        %v1029 = vmul.f32 %v1014, 1.442695
        %v1030 = vpow.pop %v1029
        %v1031 = vsel %vm999, %v1016, 0.0
        %v1032 = vsel %vm1000, %v1018, 0.0
        %v1033 = vsel %vm1001, %v1020, 0.0
        %v1034 = vsel %vm1002, %v1022, 0.0
        %v1035 = vsel %vm1003, %v1024, 0.0
        %v1036 = vsel %vm1004, %v1026, 0.0
        %v1037 = vsel %vm1005, %v1028, 0.0
        %v1038 = vsel %vm1006, %v1030, 0.0
        %1039 = vadd.xlane.f32.xlu0 %v1031
        %v1040 = vpop.xlane.xlu0 %1039
        %1041 = vadd.xlane.f32.xlu0 %v1032
        %v1042 = vpop.xlane.xlu0 %1041
        %1043 = vadd.xlane.f32.xlu0 %v1033
        %v1044 = vpop.xlane.xlu0 %1043
        %1045 = vadd.xlane.f32.xlu0 %v1034
        %v1046 = vpop.xlane.xlu0 %1045
        %1047 = vadd.xlane.f32.xlu0 %v1035
        %v1048 = vpop.xlane.xlu0 %1047
        %1049 = vadd.xlane.f32.xlu0 %v1036
        %v1050 = vpop.xlane.xlu0 %1049
        %1051 = vadd.xlane.f32.xlu0 %v1037
        %v1052 = vpop.xlane.xlu0 %1051
        %1053 = vadd.xlane.f32.xlu0 %v1038
        %v1054 = vpop.xlane.xlu0 %1053
        %v1055 = vrcp.pop %v1040
        %v1056 = vrcp.pop %v1042
        %v1057 = vrcp.pop %v1044
        %v1058 = vrcp.pop %v1046
        %v1059 = vrcp.pop %v1048
        %v1060 = vrcp.pop %v1050
        %v1061 = vrcp.pop %v1052
        %v1062 = vrcp.pop %v1054
        %v1063 = vmul.f32 %v1031, %v1055
        %v1064 = vmul.f32 %v1032, %v1056
        %v1065 = vmul.f32 %v1033, %v1057
        %v1066 = vmul.f32 %v1034, %v1058
        %v1067 = vmul.f32 %v1035, %v1059
        %v1068 = vmul.f32 %v1036, %v1060
        %v1069 = vmul.f32 %v1037, %v1061
        %v1070 = vmul.f32 %v1038, %v1062
        %1071 = vst [vmem:[%s203 + $0x40] sm:$0xff] %v1063
        %1072 = vst [vmem:[%s203 + $0x48] sm:$0xff] %v1064
        %1073 = vst [vmem:[%s203 + $0x50] sm:$0xff] %v1065
        %1074 = vst [vmem:[%s203 + $0x58] sm:$0xff] %v1066
        %1075 = vst [vmem:[%s203 + $0x60] sm:$0xff] %v1067
        %1076 = vst [vmem:[%s203 + $0x68] sm:$0xff] %v1068
        %1077 = vst [vmem:[%s203 + $0x70] sm:$0xff] %v1069
        %1078 = vst [vmem:[%s203 + $0x78] sm:$0xff] %v1070
        %s1079 = sand.u32 %s97, 1
        %s1080 = scalar_lea.sflag [#allocation4], %s1079
        %s1081 = sand.u32 %s97, 1
        %s1082 = smul.addr %s1081, 128
        %s1083 = scalar_lea.vmem [#allocation7], %s1082
        // Predicated region
        $region41: #{tpu_custom_call.1} parent=31 // pred_check
          %p1084 = pneg %p107
        $region42: #{tpu_custom_call.1} parent=31 // pred_check_branch
          %1086 = sbr.rel (%p1084) target = $region44
        $region43: #{tpu_custom_call.1} parent=31 // pred_region
          %s1087 = smul.u32 16, %s21
          %s1089 = ssub.s32 2048, 2048
          %1090 = vsyncadd %s1080, %s1089
          %s1091 = smul.addr %s1087, 128
          %s1092 = scalar_lea.hbm %s3, %s1091
          %s1093 = sshll.u32 %s1083, 4
          %s1094 = int_to_ptr.vmem [resolvable:$true] %s1093
          %1099 = dma.vmem_to_hbm [thread:$0]  %s1094, 2048, %s1092, %s1080, 128, 128, 8
        $region44: #{tpu_custom_call.1} parent=31 // pred_fallthru
          _
      $region32: #{tpu_custom_call.1} parent=5 // pred_fallthru
        _
      %p1100 = scmp.le.s32.totalorder 2, %s16
      // Predicated region
      $region45: #{tpu_custom_call.1} parent=5 // pred_check
        %p1101 = pneg %p1100
      $region46: #{tpu_custom_call.1} parent=5 // pred_check_branch
        %1103 = sbr.rel (%p1101) target = $region48
      $region47: #{tpu_custom_call.1} parent=5 // pred_region
        %s1104 = ssub.s32 %s16, 2
        // Predicated region
        $region49: #{tpu_custom_call.1} parent=47 // pred_check
          %p1105 = pneg %p113
        $region50: #{tpu_custom_call.1} parent=47 // pred_check_branch
          %1107 = sbr.rel (%p1105) target = $region52
        $region51: #{tpu_custom_call.1} parent=47 // pred_region
          %s1108 = sand.u32 %s98, 1
          %s1109 = scalar_lea.sflag [#allocation4], %s1108
          %s1110 = sand.u32 %s98, 1
          %s1111 = smul.addr %s1110, 128
          %s1112 = scalar_lea.vmem [#allocation7], %s1111
          %1113 = dma.done %s1109, 2048
        $region52: #{tpu_custom_call.1} parent=47 // pred_fallthru
          _
      $region48: #{tpu_custom_call.1} parent=5 // pred_fallthru
        _
    $region6: #{tpu_custom_call.1} parent=1 // loop_footer
      %s20 = sadd.s32 1, %s16
    $region7: #{tpu_custom_call.1} parent=1 // loop_footer_branch
      %15 = sbr.rel target = $region3
    $region8: #{tpu_custom_call.1} parent=1 // loop_exit
      _
    %1114 = vsyncpa [#allocation3], 1
    %s1115 = scalar_lea.sflag [#allocation3], 1
    %1116 = vsyncpa %s1115, 1
    %1117 = vsyncpa [#allocation6], 1
    %1118 = vsyncpa [#allocation4], 1
    %s1119 = scalar_lea.sflag [#allocation4], 1
    %1120 = vsyncpa %s1119, 1

</llo_original>
